<compile_context>
chip_gen: v7x
topology: tpu7x:2x2x1
jax: 0.10.0
libtpu: 0.0.40
codegen_flags: <defaults>
</compile_context>

<pallas_src>
import functools

import jax
import jax.numpy as jnp
from jax import lax
from jax.experimental import pallas as pl
from jax.experimental.pallas import tpu as pltpu

KSIZE = 7            # spatial-attention conv kernel size (static)
P = KSIZE // 2       # SAME padding


def cbam_kernel(x_ref, w1t_ref, w2t_ref, cmask_ref, rmask_ref, wsp_ref, bsp_ref,
                o_ref, *, W):
    """One grid step: a lane-dense (Nb, C, H*W) slab of the batch."""
    Nb, C, HW = x_ref.shape

    x = x_ref[...]                                        # native dtype; no f32 slab copy

    # ---------------- Channel attention (batched over the block) ----------------
    avg = jnp.mean(x, axis=2, dtype=jnp.float32)          # (Nb, C) global avg pool, f32 acc
    # NOTE: for small block_n these matmuls underfill the MXU; FLOPs are
    # negligible, only revisit if the bundle dump shows MXU drain on the path.
    h = jnp.maximum(
        jnp.dot(avg, w1t_ref[...], preferred_element_type=jnp.float32), 0.0)   # (Nb, Cr)
    z = jnp.dot(h, w2t_ref[...], preferred_element_type=jnp.float32)           # (Nb, C)
    ca = jax.nn.sigmoid(z)                                # (Nb, C) f32

    # ---------------- Spatial attention (lane-dense roll-based 7x7 conv) --------
    mx = jnp.max(x, axis=1).astype(jnp.float32)           # (Nb, HW) channel max
    mn = jnp.mean(x, axis=1, dtype=jnp.float32)           # (Nb, HW) channel mean

    cmask = cmask_ref[...]                                # (7, HW) column-validity masks
    rmask = rmask_ref[...]                                # (7, HW) row-validity masks

    # Column pass: 7 column-shifted, edge-masked copies of each pooled map.
    cs_mx, cs_mn = [], []
    for j in range(KSIZE):
        dw = j - P
        if dw == 0:
            cs_mx.append(mx)
            cs_mn.append(mn)
        else:
            sh = (-dw) % HW                               # out[p] = src[p + dw]
            m = cmask[j:j + 1, :]                         # (1, HW)
            cs_mx.append(pltpu.roll(mx, shift=sh, axis=1) * m)
            cs_mn.append(pltpu.roll(mn, shift=sh, axis=1) * m)

    # Row pass: per dh, weighted sum over dw (two independent chains), then one
    # row roll + row mask.  The 7 dh terms are independent -> ILP on the VALUs.
    acc = None
    for i in range(KSIZE):
        dh = i - P
        a_mx = cs_mx[0] * wsp_ref[i * KSIZE]
        a_mn = cs_mn[0] * wsp_ref[KSIZE * KSIZE + i * KSIZE]
        for j in range(1, KSIZE):
            a_mx = a_mx + cs_mx[j] * wsp_ref[i * KSIZE + j]
            a_mn = a_mn + cs_mn[j] * wsp_ref[KSIZE * KSIZE + i * KSIZE + j]
        inner = a_mx + a_mn                               # (Nb, HW)
        if dh != 0:
            sh = (-dh * W) % HW                           # out[p] = inner[p + dh*W]
            inner = pltpu.roll(inner, shift=sh, axis=1) * rmask[i:i + 1, :]
        acc = inner if acc is None else acc + inner

    sa = jax.nn.sigmoid(acc + bsp_ref[0])                 # (Nb, HW) f32

    # ---------------- Combine (factored): out = x * (ca + sa) ----------------
    # Native-dtype multiply (bf16 VPU on v6e/v7x). On v5e with bf16 inputs the
    # f32 combine path would be preferred; demo inputs are f32 so identical.
    attn = ca[:, :, None] + sa[:, None, :]                # (Nb, C, HW) f32
    o_ref[...] = (x * attn.astype(x.dtype)).astype(o_ref.dtype)


def _footprint_per_batch(C, HW, itemsize):
    # ~2x input block (double buffer) + ~2x output block (double buffer)
    # + ~2 f32 slab intermediates (attn broadcast / combine temps)
    # + a handful of (Nb, HW) f32 conv temporaries.
    return C * HW * (4 * itemsize + 2 * 4) + 16 * HW * 4


def _pick_block_n(N, C, HW, itemsize, target_bytes=24 << 20):
    per_batch = _footprint_per_batch(C, HW, itemsize)
    max_b = max(1, min(N, target_bytes // max(per_batch, 1)))
    divisors = [b for b in range(max_b, 0, -1) if N % b == 0]
    if not divisors:
        return 1
    b_full = divisors[0]
    # Keep >=2 grid steps (v7x megacore sharding of the batch axis) only when
    # it costs at most a 2x smaller block; otherwise take the biggest block
    # (v5e/v6e are single-TC and strictly prefer bigger resident tiles).
    for b in divisors:
        if N // b >= 2 and 2 * b >= b_full:
            return b
    return b_full


def cbam_forward(x, w1, w2, wsp, bsp, *, block_n=None):
    """x: (N, C, H, W); w1: (Cr, C); w2: (C, Cr); wsp: (1, 2, 7, 7); bsp: (1,)."""
    N, C, H, W = x.shape
    Cr = w1.shape[0]
    HW = H * W

    if block_n is None:
        block_n = _pick_block_n(N, C, HW, x.dtype.itemsize)
    assert N % block_n == 0

    # Lane-dense layout for the kernel: last dim = H*W.
    x_flat = x.reshape(N, C, HW)
    w1t = w1.T.astype(jnp.float32)                        # (C, Cr)
    w2t = w2.T.astype(jnp.float32)                        # (Cr, C)
    wsp_flat = wsp.reshape(-1).astype(jnp.float32)        # (2*7*7,) ordered [chan, kh, kw]
    bsp = bsp.astype(jnp.float32)

    # Edge-validity masks for the roll-based SAME-padded conv (tiny, precomputed).
    pos = jnp.arange(HW, dtype=jnp.int32)
    wcoord = pos % W
    hcoord = pos // W
    col_masks = jnp.stack(
        [((wcoord + d >= 0) & (wcoord + d < W)).astype(jnp.float32)
         for d in range(-P, P + 1)])                      # (7, HW)
    row_masks = jnp.stack(
        [((hcoord + d >= 0) & (hcoord + d < H)).astype(jnp.float32)
         for d in range(-P, P + 1)])                      # (7, HW)

    # Only raise the scoped VMEM limit when the block is actually big.
    est = _footprint_per_batch(C, HW, x.dtype.itemsize) * block_n \
        + (2 * KSIZE * HW + 2 * C * Cr) * 4
    vmem_limit = None
    if est > (24 << 20):
        vmem_limit = min(max(32 << 20, int(est * 1.25)), 96 << 20)

    kernel = functools.partial(cbam_kernel, W=W)

    # TODO(synk): for production shapes (e.g. C=256, H=W=56+) add a C grid axis
    # ("arbitrary") that accumulates the avg/max/mean stats across C chunks in
    # VMEM scratch and applies the combine on a second pass, instead of
    # shrinking block_n to 1 (matters most on v7x's 64 MiB VMEM).
    out_flat = pl.pallas_call(
        kernel,
        out_shape=jax.ShapeDtypeStruct((N, C, HW), x.dtype),
        grid=(N // block_n,),
        in_specs=[
            pl.BlockSpec((block_n, C, HW), lambda n: (n, 0, 0)),   # x (lane-dense)
            pl.BlockSpec((C, Cr), lambda n: (0, 0)),               # w1^T
            pl.BlockSpec((Cr, C), lambda n: (0, 0)),               # w2^T
            pl.BlockSpec((KSIZE, HW), lambda n: (0, 0)),           # column masks
            pl.BlockSpec((KSIZE, HW), lambda n: (0, 0)),           # row masks
            pl.BlockSpec(memory_space=pltpu.MemorySpace.SMEM),     # conv taps (98,)
            pl.BlockSpec(memory_space=pltpu.MemorySpace.SMEM),     # conv bias (1,)
        ],
        out_specs=pl.BlockSpec((block_n, C, HW), lambda n: (n, 0, 0)),
        compiler_params=pltpu.CompilerParams(
            dimension_semantics=("parallel",),
            vmem_limit_bytes=vmem_limit,
        ),
    )(x_flat, w1t, w2t, col_masks, row_masks, wsp_flat, bsp)

    return out_flat.reshape(N, C, H, W)


def cbam_reference(x, w1, w2, wsp, bsp):
    """Pure-JAX reference mirroring the PyTorch forward (for correctness check)."""
    # Channel attention
    xa = jnp.mean(x, axis=(2, 3))                             # (N, C)
    h = jnp.maximum(xa @ w1.T, 0.0)                           # (N, Cr)
    z = h @ w2.T                                              # (N, C)
    ca = jax.nn.sigmoid(z)[:, :, None, None]                  # (N, C, 1, 1)
    # Spatial attention
    mx = jnp.max(x, axis=1, keepdims=True)                    # (N, 1, H, W)
    mn = jnp.mean(x, axis=1, keepdims=True)                   # (N, 1, H, W)
    sp_in = jnp.concatenate([mx, mn], axis=1)                 # (N, 2, H, W)
    conv = lax.conv_general_dilated(
        sp_in, wsp, window_strides=(1, 1), padding="SAME",
        dimension_numbers=("NCHW", "OIHW", "NCHW"))
    sa = jax.nn.sigmoid(conv + bsp[0])                        # (N, 1, H, W)
    return x * ca + x * sa


if __name__ == "__main__":
    N, C, H, W = 2, 16, 16, 16
    reduction = 4
    Cr = C // reduction

    key = jax.random.PRNGKey(0)
    kx, k1, k2, k3, k4 = jax.random.split(key, 5)

    x = jax.random.normal(kx, (N, C, H, W), dtype=jnp.float32)
    # Conv2d(C, Cr, 1, bias=False) weight (Cr, C, 1, 1) -> stored as (Cr, C)
    w1 = jax.random.normal(k1, (Cr, C), dtype=jnp.float32) * 0.2
    # Conv2d(Cr, C, 1, bias=False) weight (C, Cr, 1, 1) -> stored as (C, Cr)
    w2 = jax.random.normal(k2, (C, Cr), dtype=jnp.float32) * 0.2
    # Conv2d(2, 1, 7, padding=3) weight (1, 2, 7, 7) + bias (1,)
    wsp = jax.random.normal(k3, (1, 2, KSIZE, KSIZE), dtype=jnp.float32) * 0.1
    bsp = jax.random.normal(k4, (1,), dtype=jnp.float32) * 0.1

    out = cbam_forward(x, w1, w2, wsp, bsp)
    out = jax.block_until_ready(out)

    ref = cbam_reference(x, w1, w2, wsp, bsp)
    if not jnp.allclose(out, ref, atol=1e-4, rtol=1e-4):
        max_err = float(jnp.max(jnp.abs(out - ref)))
        raise AssertionError(f"Pallas CBAM mismatch vs reference (max abs err {max_err})")

    print("KERNEL_OK")
</pallas_src>

<mosaic_0001>
module attributes {stable_mosaic.version = 11 : i64} {
  func.func @cbam_kernel(%arg0: i32, %arg1: memref<1x16x256xf32, #tpu.memory_space<vmem>>, %arg2: memref<16x4xf32, #tpu.memory_space<vmem>>, %arg3: memref<4x16xf32, #tpu.memory_space<vmem>>, %arg4: memref<7x256xf32, #tpu.memory_space<vmem>>, %arg5: memref<7x256xf32, #tpu.memory_space<vmem>>, %arg6: memref<98xf32, #tpu.memory_space<smem>>, %arg7: memref<1xf32, #tpu.memory_space<smem>>, %arg8: memref<1x16x256xf32, #tpu.memory_space<vmem>>) attributes {dimension_semantics = [#tpu.dimension_semantics<parallel>], iteration_bounds = array<i64: 2>, scalar_prefetch = 0 : i64, scratch_operands = 0 : i64, tpu.core_type = #tpu.core_type<tc>, window_params = [{transform_indices = @transform_0, window_bounds = array<i64: 1, 16, 256>}, {pipeline_mode = #tpu.pipeline_mode<synchronous>, transform_indices = @transform_1, window_bounds = array<i64: 16, 4>}, {pipeline_mode = #tpu.pipeline_mode<synchronous>, transform_indices = @transform_2, window_bounds = array<i64: 4, 16>}, {pipeline_mode = #tpu.pipeline_mode<synchronous>, transform_indices = @transform_3, window_bounds = array<i64: 7, 256>}, {pipeline_mode = #tpu.pipeline_mode<synchronous>, transform_indices = @transform_4, window_bounds = array<i64: 7, 256>}, {transform_indices = @transform_5, window_bounds = array<i64: 98>}, {transform_indices = @transform_6, window_bounds = array<i64: 1>}, {transform_indices = @transform_7, window_bounds = array<i64: 1, 16, 256>}]} {
    %c0 = arith.constant 0 : index
    %c0_0 = arith.constant 0 : index
    %c0_1 = arith.constant 0 : index
    %0 = vector.load %arg1[%c0, %c0_0, %c0_1] : memref<1x16x256xf32, #tpu.memory_space<vmem>>, vector<1x16x256xf32>
    %cst = arith.constant dense<0.000000e+00> : vector<1x16xf32>
    %1 = vector.multi_reduction <add>, %0, %cst [2] : vector<1x16x256xf32> to vector<1x16xf32>
    %cst_2 = arith.constant 2.560000e+02 : f32
    %2 = vector.broadcast %cst_2 : f32 to vector<1x16xf32>
    %3 = arith.divf %1, %2 : vector<1x16xf32>
    %c0_3 = arith.constant 0 : index
    %c0_4 = arith.constant 0 : index
    %4 = vector.load %arg2[%c0_3, %c0_4] : memref<16x4xf32, #tpu.memory_space<vmem>>, vector<16x4xf32>
    %cst_5 = arith.constant dense<0.000000e+00> : vector<1x4xf32>
    %5 = tpu.matmul %3, %4, %cst_5 {dimension_numbers = #tpu.dot_dimension_numbers<[1], [0], [0], [1], [0, 0, 1, 1], [], []>} : vector<1x16xf32>, vector<16x4xf32>, vector<1x4xf32> -> vector<1x4xf32>
    %cst_6 = arith.constant 0.000000e+00 : f32
    %6 = vector.broadcast %cst_6 : f32 to vector<1x4xf32>
    %7 = arith.maximumf %5, %6 : vector<1x4xf32>
    %c0_7 = arith.constant 0 : index
    %c0_8 = arith.constant 0 : index
    %8 = vector.load %arg3[%c0_7, %c0_8] : memref<4x16xf32, #tpu.memory_space<vmem>>, vector<4x16xf32>
    %cst_9 = arith.constant dense<0.000000e+00> : vector<1x16xf32>
    %9 = tpu.matmul %7, %8, %cst_9 {dimension_numbers = #tpu.dot_dimension_numbers<[1], [0], [0], [1], [0, 0, 1, 1], [], []>} : vector<1x4xf32>, vector<4x16xf32>, vector<1x16xf32> -> vector<1x16xf32>
    %10 = arith.negf %9 : vector<1x16xf32>
    %11 = math.exp %10 : vector<1x16xf32>
    %cst_10 = arith.constant 1.000000e+00 : f32
    %12 = vector.broadcast %cst_10 : f32 to vector<1x16xf32>
    %13 = arith.addf %12, %11 : vector<1x16xf32>
    %14 = arith.divf %12, %13 : vector<1x16xf32>
    %cst_11 = arith.constant dense<0xFF800000> : vector<1x256xf32>
    %15 = vector.multi_reduction <maximumf>, %0, %cst_11 [1] : vector<1x16x256xf32> to vector<1x256xf32>
    %cst_12 = arith.constant dense<0.000000e+00> : vector<1x256xf32>
    %16 = vector.multi_reduction <add>, %0, %cst_12 [1] : vector<1x16x256xf32> to vector<1x256xf32>
    %cst_13 = arith.constant 1.600000e+01 : f32
    %17 = vector.broadcast %cst_13 : f32 to vector<1x256xf32>
    %18 = arith.divf %16, %17 : vector<1x256xf32>
    %c0_14 = arith.constant 0 : index
    %c0_15 = arith.constant 0 : index
    %19 = vector.load %arg4[%c0_14, %c0_15] : memref<7x256xf32, #tpu.memory_space<vmem>>, vector<7x256xf32>
    %c0_16 = arith.constant 0 : index
    %c0_17 = arith.constant 0 : index
    %20 = vector.load %arg5[%c0_16, %c0_17] : memref<7x256xf32, #tpu.memory_space<vmem>>, vector<7x256xf32>
    %21 = vector.extract_strided_slice %19 {offsets = [0, 0], sizes = [1, 256], strides = [1, 1]} : vector<7x256xf32> to vector<1x256xf32>
    %c3_i32 = arith.constant 3 : i32
    %22 = tpu.dynamic_rotate %15 by %c3_i32 dim 1 : vector<1x256xf32>, i32 -> vector<1x256xf32>
    %23 = arith.mulf %22, %21 : vector<1x256xf32>
    %c3_i32_18 = arith.constant 3 : i32
    %24 = tpu.dynamic_rotate %18 by %c3_i32_18 dim 1 : vector<1x256xf32>, i32 -> vector<1x256xf32>
    %25 = arith.mulf %24, %21 : vector<1x256xf32>
    %26 = vector.extract_strided_slice %19 {offsets = [1, 0], sizes = [1, 256], strides = [1, 1]} : vector<7x256xf32> to vector<1x256xf32>
    %c2_i32 = arith.constant 2 : i32
    %27 = tpu.dynamic_rotate %15 by %c2_i32 dim 1 : vector<1x256xf32>, i32 -> vector<1x256xf32>
    %28 = arith.mulf %27, %26 : vector<1x256xf32>
    %c2_i32_19 = arith.constant 2 : i32
    %29 = tpu.dynamic_rotate %18 by %c2_i32_19 dim 1 : vector<1x256xf32>, i32 -> vector<1x256xf32>
    %30 = arith.mulf %29, %26 : vector<1x256xf32>
    %31 = vector.extract_strided_slice %19 {offsets = [2, 0], sizes = [1, 256], strides = [1, 1]} : vector<7x256xf32> to vector<1x256xf32>
    %c1_i32 = arith.constant 1 : i32
    %32 = tpu.dynamic_rotate %15 by %c1_i32 dim 1 : vector<1x256xf32>, i32 -> vector<1x256xf32>
    %33 = arith.mulf %32, %31 : vector<1x256xf32>
    %c1_i32_20 = arith.constant 1 : i32
    %34 = tpu.dynamic_rotate %18 by %c1_i32_20 dim 1 : vector<1x256xf32>, i32 -> vector<1x256xf32>
    %35 = arith.mulf %34, %31 : vector<1x256xf32>
    %36 = vector.extract_strided_slice %19 {offsets = [4, 0], sizes = [1, 256], strides = [1, 1]} : vector<7x256xf32> to vector<1x256xf32>
    %c255_i32 = arith.constant 255 : i32
    %37 = tpu.dynamic_rotate %15 by %c255_i32 dim 1 : vector<1x256xf32>, i32 -> vector<1x256xf32>
    %38 = arith.mulf %37, %36 : vector<1x256xf32>
    %c255_i32_21 = arith.constant 255 : i32
    %39 = tpu.dynamic_rotate %18 by %c255_i32_21 dim 1 : vector<1x256xf32>, i32 -> vector<1x256xf32>
    %40 = arith.mulf %39, %36 : vector<1x256xf32>
    %41 = vector.extract_strided_slice %19 {offsets = [5, 0], sizes = [1, 256], strides = [1, 1]} : vector<7x256xf32> to vector<1x256xf32>
    %c254_i32 = arith.constant 254 : i32
    %42 = tpu.dynamic_rotate %15 by %c254_i32 dim 1 : vector<1x256xf32>, i32 -> vector<1x256xf32>
    %43 = arith.mulf %42, %41 : vector<1x256xf32>
    %c254_i32_22 = arith.constant 254 : i32
    %44 = tpu.dynamic_rotate %18 by %c254_i32_22 dim 1 : vector<1x256xf32>, i32 -> vector<1x256xf32>
    %45 = arith.mulf %44, %41 : vector<1x256xf32>
    %46 = vector.extract_strided_slice %19 {offsets = [6, 0], sizes = [1, 256], strides = [1, 1]} : vector<7x256xf32> to vector<1x256xf32>
    %c253_i32 = arith.constant 253 : i32
    %47 = tpu.dynamic_rotate %15 by %c253_i32 dim 1 : vector<1x256xf32>, i32 -> vector<1x256xf32>
    %48 = arith.mulf %47, %46 : vector<1x256xf32>
    %c253_i32_23 = arith.constant 253 : i32
    %49 = tpu.dynamic_rotate %18 by %c253_i32_23 dim 1 : vector<1x256xf32>, i32 -> vector<1x256xf32>
    %50 = arith.mulf %49, %46 : vector<1x256xf32>
    %c0_24 = arith.constant 0 : index
    %51 = memref.load %arg6[%c0_24] : memref<98xf32, #tpu.memory_space<smem>>
    %52 = vector.broadcast %51 : f32 to vector<1x256xf32>
    %53 = arith.mulf %23, %52 : vector<1x256xf32>
    %c49 = arith.constant 49 : index
    %54 = memref.load %arg6[%c49] : memref<98xf32, #tpu.memory_space<smem>>
    %55 = vector.broadcast %54 : f32 to vector<1x256xf32>
    %56 = arith.mulf %25, %55 : vector<1x256xf32>
    %c1 = arith.constant 1 : index
    %57 = memref.load %arg6[%c1] : memref<98xf32, #tpu.memory_space<smem>>
    %58 = vector.broadcast %57 : f32 to vector<1x256xf32>
    %59 = arith.mulf %28, %58 : vector<1x256xf32>
    %60 = arith.addf %53, %59 : vector<1x256xf32>
    %c50 = arith.constant 50 : index
    %61 = memref.load %arg6[%c50] : memref<98xf32, #tpu.memory_space<smem>>
    %62 = vector.broadcast %61 : f32 to vector<1x256xf32>
    %63 = arith.mulf %30, %62 : vector<1x256xf32>
    %64 = arith.addf %56, %63 : vector<1x256xf32>
    %c2 = arith.constant 2 : index
    %65 = memref.load %arg6[%c2] : memref<98xf32, #tpu.memory_space<smem>>
    %66 = vector.broadcast %65 : f32 to vector<1x256xf32>
    %67 = arith.mulf %33, %66 : vector<1x256xf32>
    %68 = arith.addf %60, %67 : vector<1x256xf32>
    %c51 = arith.constant 51 : index
    %69 = memref.load %arg6[%c51] : memref<98xf32, #tpu.memory_space<smem>>
    %70 = vector.broadcast %69 : f32 to vector<1x256xf32>
    %71 = arith.mulf %35, %70 : vector<1x256xf32>
    %72 = arith.addf %64, %71 : vector<1x256xf32>
    %c3 = arith.constant 3 : index
    %73 = memref.load %arg6[%c3] : memref<98xf32, #tpu.memory_space<smem>>
    %74 = vector.broadcast %73 : f32 to vector<1x256xf32>
    %75 = arith.mulf %15, %74 : vector<1x256xf32>
    %76 = arith.addf %68, %75 : vector<1x256xf32>
    %c52 = arith.constant 52 : index
    %77 = memref.load %arg6[%c52] : memref<98xf32, #tpu.memory_space<smem>>
    %78 = vector.broadcast %77 : f32 to vector<1x256xf32>
    %79 = arith.mulf %18, %78 : vector<1x256xf32>
    %80 = arith.addf %72, %79 : vector<1x256xf32>
    %c4 = arith.constant 4 : index
    %81 = memref.load %arg6[%c4] : memref<98xf32, #tpu.memory_space<smem>>
    %82 = vector.broadcast %81 : f32 to vector<1x256xf32>
    %83 = arith.mulf %38, %82 : vector<1x256xf32>
    %84 = arith.addf %76, %83 : vector<1x256xf32>
    %c53 = arith.constant 53 : index
    %85 = memref.load %arg6[%c53] : memref<98xf32, #tpu.memory_space<smem>>
    %86 = vector.broadcast %85 : f32 to vector<1x256xf32>
    %87 = arith.mulf %40, %86 : vector<1x256xf32>
    %88 = arith.addf %80, %87 : vector<1x256xf32>
    %c5 = arith.constant 5 : index
    %89 = memref.load %arg6[%c5] : memref<98xf32, #tpu.memory_space<smem>>
    %90 = vector.broadcast %89 : f32 to vector<1x256xf32>
    %91 = arith.mulf %43, %90 : vector<1x256xf32>
    %92 = arith.addf %84, %91 : vector<1x256xf32>
    %c54 = arith.constant 54 : index
    %93 = memref.load %arg6[%c54] : memref<98xf32, #tpu.memory_space<smem>>
    %94 = vector.broadcast %93 : f32 to vector<1x256xf32>
    %95 = arith.mulf %45, %94 : vector<1x256xf32>
    %96 = arith.addf %88, %95 : vector<1x256xf32>
    %c6 = arith.constant 6 : index
    %97 = memref.load %arg6[%c6] : memref<98xf32, #tpu.memory_space<smem>>
    %98 = vector.broadcast %97 : f32 to vector<1x256xf32>
    %99 = arith.mulf %48, %98 : vector<1x256xf32>
    %100 = arith.addf %92, %99 : vector<1x256xf32>
    %c55 = arith.constant 55 : index
    %101 = memref.load %arg6[%c55] : memref<98xf32, #tpu.memory_space<smem>>
    %102 = vector.broadcast %101 : f32 to vector<1x256xf32>
    %103 = arith.mulf %50, %102 : vector<1x256xf32>
    %104 = arith.addf %96, %103 : vector<1x256xf32>
    %105 = arith.addf %100, %104 : vector<1x256xf32>
    %c48_i32 = arith.constant 48 : i32
    %106 = tpu.dynamic_rotate %105 by %c48_i32 dim 1 : vector<1x256xf32>, i32 -> vector<1x256xf32>
    %107 = vector.extract_strided_slice %20 {offsets = [0, 0], sizes = [1, 256], strides = [1, 1]} : vector<7x256xf32> to vector<1x256xf32>
    %108 = arith.mulf %106, %107 : vector<1x256xf32>
    %c7 = arith.constant 7 : index
    %109 = memref.load %arg6[%c7] : memref<98xf32, #tpu.memory_space<smem>>
    %110 = vector.broadcast %109 : f32 to vector<1x256xf32>
    %111 = arith.mulf %23, %110 : vector<1x256xf32>
    %c56 = arith.constant 56 : index
    %112 = memref.load %arg6[%c56] : memref<98xf32, #tpu.memory_space<smem>>
    %113 = vector.broadcast %112 : f32 to vector<1x256xf32>
    %114 = arith.mulf %25, %113 : vector<1x256xf32>
    %c8 = arith.constant 8 : index
    %115 = memref.load %arg6[%c8] : memref<98xf32, #tpu.memory_space<smem>>
    %116 = vector.broadcast %115 : f32 to vector<1x256xf32>
    %117 = arith.mulf %28, %116 : vector<1x256xf32>
    %118 = arith.addf %111, %117 : vector<1x256xf32>
    %c57 = arith.constant 57 : index
    %119 = memref.load %arg6[%c57] : memref<98xf32, #tpu.memory_space<smem>>
    %120 = vector.broadcast %119 : f32 to vector<1x256xf32>
    %121 = arith.mulf %30, %120 : vector<1x256xf32>
    %122 = arith.addf %114, %121 : vector<1x256xf32>
    %c9 = arith.constant 9 : index
    %123 = memref.load %arg6[%c9] : memref<98xf32, #tpu.memory_space<smem>>
    %124 = vector.broadcast %123 : f32 to vector<1x256xf32>
    %125 = arith.mulf %33, %124 : vector<1x256xf32>
    %126 = arith.addf %118, %125 : vector<1x256xf32>
    %c58 = arith.constant 58 : index
    %127 = memref.load %arg6[%c58] : memref<98xf32, #tpu.memory_space<smem>>
    %128 = vector.broadcast %127 : f32 to vector<1x256xf32>
    %129 = arith.mulf %35, %128 : vector<1x256xf32>
    %130 = arith.addf %122, %129 : vector<1x256xf32>
    %c10 = arith.constant 10 : index
    %131 = memref.load %arg6[%c10] : memref<98xf32, #tpu.memory_space<smem>>
    %132 = vector.broadcast %131 : f32 to vector<1x256xf32>
    %133 = arith.mulf %15, %132 : vector<1x256xf32>
    %134 = arith.addf %126, %133 : vector<1x256xf32>
    %c59 = arith.constant 59 : index
    %135 = memref.load %arg6[%c59] : memref<98xf32, #tpu.memory_space<smem>>
    %136 = vector.broadcast %135 : f32 to vector<1x256xf32>
    %137 = arith.mulf %18, %136 : vector<1x256xf32>
    %138 = arith.addf %130, %137 : vector<1x256xf32>
    %c11 = arith.constant 11 : index
    %139 = memref.load %arg6[%c11] : memref<98xf32, #tpu.memory_space<smem>>
    %140 = vector.broadcast %139 : f32 to vector<1x256xf32>
    %141 = arith.mulf %38, %140 : vector<1x256xf32>
    %142 = arith.addf %134, %141 : vector<1x256xf32>
    %c60 = arith.constant 60 : index
    %143 = memref.load %arg6[%c60] : memref<98xf32, #tpu.memory_space<smem>>
    %144 = vector.broadcast %143 : f32 to vector<1x256xf32>
    %145 = arith.mulf %40, %144 : vector<1x256xf32>
    %146 = arith.addf %138, %145 : vector<1x256xf32>
    %c12 = arith.constant 12 : index
    %147 = memref.load %arg6[%c12] : memref<98xf32, #tpu.memory_space<smem>>
    %148 = vector.broadcast %147 : f32 to vector<1x256xf32>
    %149 = arith.mulf %43, %148 : vector<1x256xf32>
    %150 = arith.addf %142, %149 : vector<1x256xf32>
    %c61 = arith.constant 61 : index
    %151 = memref.load %arg6[%c61] : memref<98xf32, #tpu.memory_space<smem>>
    %152 = vector.broadcast %151 : f32 to vector<1x256xf32>
    %153 = arith.mulf %45, %152 : vector<1x256xf32>
    %154 = arith.addf %146, %153 : vector<1x256xf32>
    %c13 = arith.constant 13 : index
    %155 = memref.load %arg6[%c13] : memref<98xf32, #tpu.memory_space<smem>>
    %156 = vector.broadcast %155 : f32 to vector<1x256xf32>
    %157 = arith.mulf %48, %156 : vector<1x256xf32>
    %158 = arith.addf %150, %157 : vector<1x256xf32>
    %c62 = arith.constant 62 : index
    %159 = memref.load %arg6[%c62] : memref<98xf32, #tpu.memory_space<smem>>
    %160 = vector.broadcast %159 : f32 to vector<1x256xf32>
    %161 = arith.mulf %50, %160 : vector<1x256xf32>
    %162 = arith.addf %154, %161 : vector<1x256xf32>
    %163 = arith.addf %158, %162 : vector<1x256xf32>
    %c32_i32 = arith.constant 32 : i32
    %164 = tpu.dynamic_rotate %163 by %c32_i32 dim 1 : vector<1x256xf32>, i32 -> vector<1x256xf32>
    %165 = vector.extract_strided_slice %20 {offsets = [1, 0], sizes = [1, 256], strides = [1, 1]} : vector<7x256xf32> to vector<1x256xf32>
    %166 = arith.mulf %164, %165 : vector<1x256xf32>
    %167 = arith.addf %108, %166 : vector<1x256xf32>
    %c14 = arith.constant 14 : index
    %168 = memref.load %arg6[%c14] : memref<98xf32, #tpu.memory_space<smem>>
    %169 = vector.broadcast %168 : f32 to vector<1x256xf32>
    %170 = arith.mulf %23, %169 : vector<1x256xf32>
    %c63 = arith.constant 63 : index
    %171 = memref.load %arg6[%c63] : memref<98xf32, #tpu.memory_space<smem>>
    %172 = vector.broadcast %171 : f32 to vector<1x256xf32>
    %173 = arith.mulf %25, %172 : vector<1x256xf32>
    %c15 = arith.constant 15 : index
    %174 = memref.load %arg6[%c15] : memref<98xf32, #tpu.memory_space<smem>>
    %175 = vector.broadcast %174 : f32 to vector<1x256xf32>
    %176 = arith.mulf %28, %175 : vector<1x256xf32>
    %177 = arith.addf %170, %176 : vector<1x256xf32>
    %c64 = arith.constant 64 : index
    %178 = memref.load %arg6[%c64] : memref<98xf32, #tpu.memory_space<smem>>
    %179 = vector.broadcast %178 : f32 to vector<1x256xf32>
    %180 = arith.mulf %30, %179 : vector<1x256xf32>
    %181 = arith.addf %173, %180 : vector<1x256xf32>
    %c16 = arith.constant 16 : index
    %182 = memref.load %arg6[%c16] : memref<98xf32, #tpu.memory_space<smem>>
    %183 = vector.broadcast %182 : f32 to vector<1x256xf32>
    %184 = arith.mulf %33, %183 : vector<1x256xf32>
    %185 = arith.addf %177, %184 : vector<1x256xf32>
    %c65 = arith.constant 65 : index
    %186 = memref.load %arg6[%c65] : memref<98xf32, #tpu.memory_space<smem>>
    %187 = vector.broadcast %186 : f32 to vector<1x256xf32>
    %188 = arith.mulf %35, %187 : vector<1x256xf32>
    %189 = arith.addf %181, %188 : vector<1x256xf32>
    %c17 = arith.constant 17 : index
    %190 = memref.load %arg6[%c17] : memref<98xf32, #tpu.memory_space<smem>>
    %191 = vector.broadcast %190 : f32 to vector<1x256xf32>
    %192 = arith.mulf %15, %191 : vector<1x256xf32>
    %193 = arith.addf %185, %192 : vector<1x256xf32>
    %c66 = arith.constant 66 : index
    %194 = memref.load %arg6[%c66] : memref<98xf32, #tpu.memory_space<smem>>
    %195 = vector.broadcast %194 : f32 to vector<1x256xf32>
    %196 = arith.mulf %18, %195 : vector<1x256xf32>
    %197 = arith.addf %189, %196 : vector<1x256xf32>
    %c18 = arith.constant 18 : index
    %198 = memref.load %arg6[%c18] : memref<98xf32, #tpu.memory_space<smem>>
    %199 = vector.broadcast %198 : f32 to vector<1x256xf32>
    %200 = arith.mulf %38, %199 : vector<1x256xf32>
    %201 = arith.addf %193, %200 : vector<1x256xf32>
    %c67 = arith.constant 67 : index
    %202 = memref.load %arg6[%c67] : memref<98xf32, #tpu.memory_space<smem>>
    %203 = vector.broadcast %202 : f32 to vector<1x256xf32>
    %204 = arith.mulf %40, %203 : vector<1x256xf32>
    %205 = arith.addf %197, %204 : vector<1x256xf32>
    %c19 = arith.constant 19 : index
    %206 = memref.load %arg6[%c19] : memref<98xf32, #tpu.memory_space<smem>>
    %207 = vector.broadcast %206 : f32 to vector<1x256xf32>
    %208 = arith.mulf %43, %207 : vector<1x256xf32>
    %209 = arith.addf %201, %208 : vector<1x256xf32>
    %c68 = arith.constant 68 : index
    %210 = memref.load %arg6[%c68] : memref<98xf32, #tpu.memory_space<smem>>
    %211 = vector.broadcast %210 : f32 to vector<1x256xf32>
    %212 = arith.mulf %45, %211 : vector<1x256xf32>
    %213 = arith.addf %205, %212 : vector<1x256xf32>
    %c20 = arith.constant 20 : index
    %214 = memref.load %arg6[%c20] : memref<98xf32, #tpu.memory_space<smem>>
    %215 = vector.broadcast %214 : f32 to vector<1x256xf32>
    %216 = arith.mulf %48, %215 : vector<1x256xf32>
    %217 = arith.addf %209, %216 : vector<1x256xf32>
    %c69 = arith.constant 69 : index
    %218 = memref.load %arg6[%c69] : memref<98xf32, #tpu.memory_space<smem>>
    %219 = vector.broadcast %218 : f32 to vector<1x256xf32>
    %220 = arith.mulf %50, %219 : vector<1x256xf32>
    %221 = arith.addf %213, %220 : vector<1x256xf32>
    %222 = arith.addf %217, %221 : vector<1x256xf32>
    %c16_i32 = arith.constant 16 : i32
    %223 = tpu.dynamic_rotate %222 by %c16_i32 dim 1 : vector<1x256xf32>, i32 -> vector<1x256xf32>
    %224 = vector.extract_strided_slice %20 {offsets = [2, 0], sizes = [1, 256], strides = [1, 1]} : vector<7x256xf32> to vector<1x256xf32>
    %225 = arith.mulf %223, %224 : vector<1x256xf32>
    %226 = arith.addf %167, %225 : vector<1x256xf32>
    %c21 = arith.constant 21 : index
    %227 = memref.load %arg6[%c21] : memref<98xf32, #tpu.memory_space<smem>>
    %228 = vector.broadcast %227 : f32 to vector<1x256xf32>
    %229 = arith.mulf %23, %228 : vector<1x256xf32>
    %c70 = arith.constant 70 : index
    %230 = memref.load %arg6[%c70] : memref<98xf32, #tpu.memory_space<smem>>
    %231 = vector.broadcast %230 : f32 to vector<1x256xf32>
    %232 = arith.mulf %25, %231 : vector<1x256xf32>
    %c22 = arith.constant 22 : index
    %233 = memref.load %arg6[%c22] : memref<98xf32, #tpu.memory_space<smem>>
    %234 = vector.broadcast %233 : f32 to vector<1x256xf32>
    %235 = arith.mulf %28, %234 : vector<1x256xf32>
    %236 = arith.addf %229, %235 : vector<1x256xf32>
    %c71 = arith.constant 71 : index
    %237 = memref.load %arg6[%c71] : memref<98xf32, #tpu.memory_space<smem>>
    %238 = vector.broadcast %237 : f32 to vector<1x256xf32>
    %239 = arith.mulf %30, %238 : vector<1x256xf32>
    %240 = arith.addf %232, %239 : vector<1x256xf32>
    %c23 = arith.constant 23 : index
    %241 = memref.load %arg6[%c23] : memref<98xf32, #tpu.memory_space<smem>>
    %242 = vector.broadcast %241 : f32 to vector<1x256xf32>
    %243 = arith.mulf %33, %242 : vector<1x256xf32>
    %244 = arith.addf %236, %243 : vector<1x256xf32>
    %c72 = arith.constant 72 : index
    %245 = memref.load %arg6[%c72] : memref<98xf32, #tpu.memory_space<smem>>
    %246 = vector.broadcast %245 : f32 to vector<1x256xf32>
    %247 = arith.mulf %35, %246 : vector<1x256xf32>
    %248 = arith.addf %240, %247 : vector<1x256xf32>
    %c24 = arith.constant 24 : index
    %249 = memref.load %arg6[%c24] : memref<98xf32, #tpu.memory_space<smem>>
    %250 = vector.broadcast %249 : f32 to vector<1x256xf32>
    %251 = arith.mulf %15, %250 : vector<1x256xf32>
    %252 = arith.addf %244, %251 : vector<1x256xf32>
    %c73 = arith.constant 73 : index
    %253 = memref.load %arg6[%c73] : memref<98xf32, #tpu.memory_space<smem>>
    %254 = vector.broadcast %253 : f32 to vector<1x256xf32>
    %255 = arith.mulf %18, %254 : vector<1x256xf32>
    %256 = arith.addf %248, %255 : vector<1x256xf32>
    %c25 = arith.constant 25 : index
    %257 = memref.load %arg6[%c25] : memref<98xf32, #tpu.memory_space<smem>>
    %258 = vector.broadcast %257 : f32 to vector<1x256xf32>
    %259 = arith.mulf %38, %258 : vector<1x256xf32>
    %260 = arith.addf %252, %259 : vector<1x256xf32>
    %c74 = arith.constant 74 : index
    %261 = memref.load %arg6[%c74] : memref<98xf32, #tpu.memory_space<smem>>
    %262 = vector.broadcast %261 : f32 to vector<1x256xf32>
    %263 = arith.mulf %40, %262 : vector<1x256xf32>
    %264 = arith.addf %256, %263 : vector<1x256xf32>
    %c26 = arith.constant 26 : index
    %265 = memref.load %arg6[%c26] : memref<98xf32, #tpu.memory_space<smem>>
    %266 = vector.broadcast %265 : f32 to vector<1x256xf32>
    %267 = arith.mulf %43, %266 : vector<1x256xf32>
    %268 = arith.addf %260, %267 : vector<1x256xf32>
    %c75 = arith.constant 75 : index
    %269 = memref.load %arg6[%c75] : memref<98xf32, #tpu.memory_space<smem>>
    %270 = vector.broadcast %269 : f32 to vector<1x256xf32>
    %271 = arith.mulf %45, %270 : vector<1x256xf32>
    %272 = arith.addf %264, %271 : vector<1x256xf32>
    %c27 = arith.constant 27 : index
    %273 = memref.load %arg6[%c27] : memref<98xf32, #tpu.memory_space<smem>>
    %274 = vector.broadcast %273 : f32 to vector<1x256xf32>
    %275 = arith.mulf %48, %274 : vector<1x256xf32>
    %276 = arith.addf %268, %275 : vector<1x256xf32>
    %c76 = arith.constant 76 : index
    %277 = memref.load %arg6[%c76] : memref<98xf32, #tpu.memory_space<smem>>
    %278 = vector.broadcast %277 : f32 to vector<1x256xf32>
    %279 = arith.mulf %50, %278 : vector<1x256xf32>
    %280 = arith.addf %272, %279 : vector<1x256xf32>
    %281 = arith.addf %276, %280 : vector<1x256xf32>
    %282 = arith.addf %226, %281 : vector<1x256xf32>
    %c28 = arith.constant 28 : index
    %283 = memref.load %arg6[%c28] : memref<98xf32, #tpu.memory_space<smem>>
    %284 = vector.broadcast %283 : f32 to vector<1x256xf32>
    %285 = arith.mulf %23, %284 : vector<1x256xf32>
    %c77 = arith.constant 77 : index
    %286 = memref.load %arg6[%c77] : memref<98xf32, #tpu.memory_space<smem>>
    %287 = vector.broadcast %286 : f32 to vector<1x256xf32>
    %288 = arith.mulf %25, %287 : vector<1x256xf32>
    %c29 = arith.constant 29 : index
    %289 = memref.load %arg6[%c29] : memref<98xf32, #tpu.memory_space<smem>>
    %290 = vector.broadcast %289 : f32 to vector<1x256xf32>
    %291 = arith.mulf %28, %290 : vector<1x256xf32>
    %292 = arith.addf %285, %291 : vector<1x256xf32>
    %c78 = arith.constant 78 : index
    %293 = memref.load %arg6[%c78] : memref<98xf32, #tpu.memory_space<smem>>
    %294 = vector.broadcast %293 : f32 to vector<1x256xf32>
    %295 = arith.mulf %30, %294 : vector<1x256xf32>
    %296 = arith.addf %288, %295 : vector<1x256xf32>
    %c30 = arith.constant 30 : index
    %297 = memref.load %arg6[%c30] : memref<98xf32, #tpu.memory_space<smem>>
    %298 = vector.broadcast %297 : f32 to vector<1x256xf32>
    %299 = arith.mulf %33, %298 : vector<1x256xf32>
    %300 = arith.addf %292, %299 : vector<1x256xf32>
    %c79 = arith.constant 79 : index
    %301 = memref.load %arg6[%c79] : memref<98xf32, #tpu.memory_space<smem>>
    %302 = vector.broadcast %301 : f32 to vector<1x256xf32>
    %303 = arith.mulf %35, %302 : vector<1x256xf32>
    %304 = arith.addf %296, %303 : vector<1x256xf32>
    %c31 = arith.constant 31 : index
    %305 = memref.load %arg6[%c31] : memref<98xf32, #tpu.memory_space<smem>>
    %306 = vector.broadcast %305 : f32 to vector<1x256xf32>
    %307 = arith.mulf %15, %306 : vector<1x256xf32>
    %308 = arith.addf %300, %307 : vector<1x256xf32>
    %c80 = arith.constant 80 : index
    %309 = memref.load %arg6[%c80] : memref<98xf32, #tpu.memory_space<smem>>
    %310 = vector.broadcast %309 : f32 to vector<1x256xf32>
    %311 = arith.mulf %18, %310 : vector<1x256xf32>
    %312 = arith.addf %304, %311 : vector<1x256xf32>
    %c32 = arith.constant 32 : index
    %313 = memref.load %arg6[%c32] : memref<98xf32, #tpu.memory_space<smem>>
    %314 = vector.broadcast %313 : f32 to vector<1x256xf32>
    %315 = arith.mulf %38, %314 : vector<1x256xf32>
    %316 = arith.addf %308, %315 : vector<1x256xf32>
    %c81 = arith.constant 81 : index
    %317 = memref.load %arg6[%c81] : memref<98xf32, #tpu.memory_space<smem>>
    %318 = vector.broadcast %317 : f32 to vector<1x256xf32>
    %319 = arith.mulf %40, %318 : vector<1x256xf32>
    %320 = arith.addf %312, %319 : vector<1x256xf32>
    %c33 = arith.constant 33 : index
    %321 = memref.load %arg6[%c33] : memref<98xf32, #tpu.memory_space<smem>>
    %322 = vector.broadcast %321 : f32 to vector<1x256xf32>
    %323 = arith.mulf %43, %322 : vector<1x256xf32>
    %324 = arith.addf %316, %323 : vector<1x256xf32>
    %c82 = arith.constant 82 : index
    %325 = memref.load %arg6[%c82] : memref<98xf32, #tpu.memory_space<smem>>
    %326 = vector.broadcast %325 : f32 to vector<1x256xf32>
    %327 = arith.mulf %45, %326 : vector<1x256xf32>
    %328 = arith.addf %320, %327 : vector<1x256xf32>
    %c34 = arith.constant 34 : index
    %329 = memref.load %arg6[%c34] : memref<98xf32, #tpu.memory_space<smem>>
    %330 = vector.broadcast %329 : f32 to vector<1x256xf32>
    %331 = arith.mulf %48, %330 : vector<1x256xf32>
    %332 = arith.addf %324, %331 : vector<1x256xf32>
    %c83 = arith.constant 83 : index
    %333 = memref.load %arg6[%c83] : memref<98xf32, #tpu.memory_space<smem>>
    %334 = vector.broadcast %333 : f32 to vector<1x256xf32>
    %335 = arith.mulf %50, %334 : vector<1x256xf32>
    %336 = arith.addf %328, %335 : vector<1x256xf32>
    %337 = arith.addf %332, %336 : vector<1x256xf32>
    %c240_i32 = arith.constant 240 : i32
    %338 = tpu.dynamic_rotate %337 by %c240_i32 dim 1 : vector<1x256xf32>, i32 -> vector<1x256xf32>
    %339 = vector.extract_strided_slice %20 {offsets = [4, 0], sizes = [1, 256], strides = [1, 1]} : vector<7x256xf32> to vector<1x256xf32>
    %340 = arith.mulf %338, %339 : vector<1x256xf32>
    %341 = arith.addf %282, %340 : vector<1x256xf32>
    %c35 = arith.constant 35 : index
    %342 = memref.load %arg6[%c35] : memref<98xf32, #tpu.memory_space<smem>>
    %343 = vector.broadcast %342 : f32 to vector<1x256xf32>
    %344 = arith.mulf %23, %343 : vector<1x256xf32>
    %c84 = arith.constant 84 : index
    %345 = memref.load %arg6[%c84] : memref<98xf32, #tpu.memory_space<smem>>
    %346 = vector.broadcast %345 : f32 to vector<1x256xf32>
    %347 = arith.mulf %25, %346 : vector<1x256xf32>
    %c36 = arith.constant 36 : index
    %348 = memref.load %arg6[%c36] : memref<98xf32, #tpu.memory_space<smem>>
    %349 = vector.broadcast %348 : f32 to vector<1x256xf32>
    %350 = arith.mulf %28, %349 : vector<1x256xf32>
    %351 = arith.addf %344, %350 : vector<1x256xf32>
    %c85 = arith.constant 85 : index
    %352 = memref.load %arg6[%c85] : memref<98xf32, #tpu.memory_space<smem>>
    %353 = vector.broadcast %352 : f32 to vector<1x256xf32>
    %354 = arith.mulf %30, %353 : vector<1x256xf32>
    %355 = arith.addf %347, %354 : vector<1x256xf32>
    %c37 = arith.constant 37 : index
    %356 = memref.load %arg6[%c37] : memref<98xf32, #tpu.memory_space<smem>>
    %357 = vector.broadcast %356 : f32 to vector<1x256xf32>
    %358 = arith.mulf %33, %357 : vector<1x256xf32>
    %359 = arith.addf %351, %358 : vector<1x256xf32>
    %c86 = arith.constant 86 : index
    %360 = memref.load %arg6[%c86] : memref<98xf32, #tpu.memory_space<smem>>
    %361 = vector.broadcast %360 : f32 to vector<1x256xf32>
    %362 = arith.mulf %35, %361 : vector<1x256xf32>
    %363 = arith.addf %355, %362 : vector<1x256xf32>
    %c38 = arith.constant 38 : index
    %364 = memref.load %arg6[%c38] : memref<98xf32, #tpu.memory_space<smem>>
    %365 = vector.broadcast %364 : f32 to vector<1x256xf32>
    %366 = arith.mulf %15, %365 : vector<1x256xf32>
    %367 = arith.addf %359, %366 : vector<1x256xf32>
    %c87 = arith.constant 87 : index
    %368 = memref.load %arg6[%c87] : memref<98xf32, #tpu.memory_space<smem>>
    %369 = vector.broadcast %368 : f32 to vector<1x256xf32>
    %370 = arith.mulf %18, %369 : vector<1x256xf32>
    %371 = arith.addf %363, %370 : vector<1x256xf32>
    %c39 = arith.constant 39 : index
    %372 = memref.load %arg6[%c39] : memref<98xf32, #tpu.memory_space<smem>>
    %373 = vector.broadcast %372 : f32 to vector<1x256xf32>
    %374 = arith.mulf %38, %373 : vector<1x256xf32>
    %375 = arith.addf %367, %374 : vector<1x256xf32>
    %c88 = arith.constant 88 : index
    %376 = memref.load %arg6[%c88] : memref<98xf32, #tpu.memory_space<smem>>
    %377 = vector.broadcast %376 : f32 to vector<1x256xf32>
    %378 = arith.mulf %40, %377 : vector<1x256xf32>
    %379 = arith.addf %371, %378 : vector<1x256xf32>
    %c40 = arith.constant 40 : index
    %380 = memref.load %arg6[%c40] : memref<98xf32, #tpu.memory_space<smem>>
    %381 = vector.broadcast %380 : f32 to vector<1x256xf32>
    %382 = arith.mulf %43, %381 : vector<1x256xf32>
    %383 = arith.addf %375, %382 : vector<1x256xf32>
    %c89 = arith.constant 89 : index
    %384 = memref.load %arg6[%c89] : memref<98xf32, #tpu.memory_space<smem>>
    %385 = vector.broadcast %384 : f32 to vector<1x256xf32>
    %386 = arith.mulf %45, %385 : vector<1x256xf32>
    %387 = arith.addf %379, %386 : vector<1x256xf32>
    %c41 = arith.constant 41 : index
    %388 = memref.load %arg6[%c41] : memref<98xf32, #tpu.memory_space<smem>>
    %389 = vector.broadcast %388 : f32 to vector<1x256xf32>
    %390 = arith.mulf %48, %389 : vector<1x256xf32>
    %391 = arith.addf %383, %390 : vector<1x256xf32>
    %c90 = arith.constant 90 : index
    %392 = memref.load %arg6[%c90] : memref<98xf32, #tpu.memory_space<smem>>
    %393 = vector.broadcast %392 : f32 to vector<1x256xf32>
    %394 = arith.mulf %50, %393 : vector<1x256xf32>
    %395 = arith.addf %387, %394 : vector<1x256xf32>
    %396 = arith.addf %391, %395 : vector<1x256xf32>
    %c224_i32 = arith.constant 224 : i32
    %397 = tpu.dynamic_rotate %396 by %c224_i32 dim 1 : vector<1x256xf32>, i32 -> vector<1x256xf32>
    %398 = vector.extract_strided_slice %20 {offsets = [5, 0], sizes = [1, 256], strides = [1, 1]} : vector<7x256xf32> to vector<1x256xf32>
    %399 = arith.mulf %397, %398 : vector<1x256xf32>
    %400 = arith.addf %341, %399 : vector<1x256xf32>
    %c42 = arith.constant 42 : index
    %401 = memref.load %arg6[%c42] : memref<98xf32, #tpu.memory_space<smem>>
    %402 = vector.broadcast %401 : f32 to vector<1x256xf32>
    %403 = arith.mulf %23, %402 : vector<1x256xf32>
    %c91 = arith.constant 91 : index
    %404 = memref.load %arg6[%c91] : memref<98xf32, #tpu.memory_space<smem>>
    %405 = vector.broadcast %404 : f32 to vector<1x256xf32>
    %406 = arith.mulf %25, %405 : vector<1x256xf32>
    %c43 = arith.constant 43 : index
    %407 = memref.load %arg6[%c43] : memref<98xf32, #tpu.memory_space<smem>>
    %408 = vector.broadcast %407 : f32 to vector<1x256xf32>
    %409 = arith.mulf %28, %408 : vector<1x256xf32>
    %410 = arith.addf %403, %409 : vector<1x256xf32>
    %c92 = arith.constant 92 : index
    %411 = memref.load %arg6[%c92] : memref<98xf32, #tpu.memory_space<smem>>
    %412 = vector.broadcast %411 : f32 to vector<1x256xf32>
    %413 = arith.mulf %30, %412 : vector<1x256xf32>
    %414 = arith.addf %406, %413 : vector<1x256xf32>
    %c44 = arith.constant 44 : index
    %415 = memref.load %arg6[%c44] : memref<98xf32, #tpu.memory_space<smem>>
    %416 = vector.broadcast %415 : f32 to vector<1x256xf32>
    %417 = arith.mulf %33, %416 : vector<1x256xf32>
    %418 = arith.addf %410, %417 : vector<1x256xf32>
    %c93 = arith.constant 93 : index
    %419 = memref.load %arg6[%c93] : memref<98xf32, #tpu.memory_space<smem>>
    %420 = vector.broadcast %419 : f32 to vector<1x256xf32>
    %421 = arith.mulf %35, %420 : vector<1x256xf32>
    %422 = arith.addf %414, %421 : vector<1x256xf32>
    %c45 = arith.constant 45 : index
    %423 = memref.load %arg6[%c45] : memref<98xf32, #tpu.memory_space<smem>>
    %424 = vector.broadcast %423 : f32 to vector<1x256xf32>
    %425 = arith.mulf %15, %424 : vector<1x256xf32>
    %426 = arith.addf %418, %425 : vector<1x256xf32>
    %c94 = arith.constant 94 : index
    %427 = memref.load %arg6[%c94] : memref<98xf32, #tpu.memory_space<smem>>
    %428 = vector.broadcast %427 : f32 to vector<1x256xf32>
    %429 = arith.mulf %18, %428 : vector<1x256xf32>
    %430 = arith.addf %422, %429 : vector<1x256xf32>
    %c46 = arith.constant 46 : index
    %431 = memref.load %arg6[%c46] : memref<98xf32, #tpu.memory_space<smem>>
    %432 = vector.broadcast %431 : f32 to vector<1x256xf32>
    %433 = arith.mulf %38, %432 : vector<1x256xf32>
    %434 = arith.addf %426, %433 : vector<1x256xf32>
    %c95 = arith.constant 95 : index
    %435 = memref.load %arg6[%c95] : memref<98xf32, #tpu.memory_space<smem>>
    %436 = vector.broadcast %435 : f32 to vector<1x256xf32>
    %437 = arith.mulf %40, %436 : vector<1x256xf32>
    %438 = arith.addf %430, %437 : vector<1x256xf32>
    %c47 = arith.constant 47 : index
    %439 = memref.load %arg6[%c47] : memref<98xf32, #tpu.memory_space<smem>>
    %440 = vector.broadcast %439 : f32 to vector<1x256xf32>
    %441 = arith.mulf %43, %440 : vector<1x256xf32>
    %442 = arith.addf %434, %441 : vector<1x256xf32>
    %c96 = arith.constant 96 : index
    %443 = memref.load %arg6[%c96] : memref<98xf32, #tpu.memory_space<smem>>
    %444 = vector.broadcast %443 : f32 to vector<1x256xf32>
    %445 = arith.mulf %45, %444 : vector<1x256xf32>
    %446 = arith.addf %438, %445 : vector<1x256xf32>
    %c48 = arith.constant 48 : index
    %447 = memref.load %arg6[%c48] : memref<98xf32, #tpu.memory_space<smem>>
    %448 = vector.broadcast %447 : f32 to vector<1x256xf32>
    %449 = arith.mulf %48, %448 : vector<1x256xf32>
    %450 = arith.addf %442, %449 : vector<1x256xf32>
    %c97 = arith.constant 97 : index
    %451 = memref.load %arg6[%c97] : memref<98xf32, #tpu.memory_space<smem>>
    %452 = vector.broadcast %451 : f32 to vector<1x256xf32>
    %453 = arith.mulf %50, %452 : vector<1x256xf32>
    %454 = arith.addf %446, %453 : vector<1x256xf32>
    %455 = arith.addf %450, %454 : vector<1x256xf32>
    %c208_i32 = arith.constant 208 : i32
    %456 = tpu.dynamic_rotate %455 by %c208_i32 dim 1 : vector<1x256xf32>, i32 -> vector<1x256xf32>
    %457 = vector.extract_strided_slice %20 {offsets = [6, 0], sizes = [1, 256], strides = [1, 1]} : vector<7x256xf32> to vector<1x256xf32>
    %458 = arith.mulf %456, %457 : vector<1x256xf32>
    %459 = arith.addf %400, %458 : vector<1x256xf32>
    %c0_25 = arith.constant 0 : index
    %460 = memref.load %arg7[%c0_25] : memref<1xf32, #tpu.memory_space<smem>>
    %461 = vector.broadcast %460 : f32 to vector<1x256xf32>
    %462 = arith.addf %459, %461 : vector<1x256xf32>
    %463 = arith.negf %462 : vector<1x256xf32>
    %464 = math.exp %463 : vector<1x256xf32>
    %cst_26 = arith.constant 1.000000e+00 : f32
    %465 = vector.broadcast %cst_26 : f32 to vector<1x256xf32>
    %466 = arith.addf %465, %464 : vector<1x256xf32>
    %467 = arith.divf %465, %466 : vector<1x256xf32>
    %468 = vector.shape_cast %14 : vector<1x16xf32> to vector<1x16x1xf32>
    %469 = vector.shape_cast %467 : vector<1x256xf32> to vector<1x1x256xf32>
    %470 = vector.broadcast %468 : vector<1x16x1xf32> to vector<1x16x256xf32>
    %471 = vector.broadcast %469 : vector<1x1x256xf32> to vector<1x16x256xf32>
    %472 = arith.addf %470, %471 : vector<1x16x256xf32>
    %473 = arith.mulf %0, %472 : vector<1x16x256xf32>
    %c0_27 = arith.constant 0 : index
    %c0_28 = arith.constant 0 : index
    %c0_29 = arith.constant 0 : index
    %474 = vector.load %arg8[%c0_27, %c0_28, %c0_29] : memref<1x16x256xf32, #tpu.memory_space<vmem>>, vector<1x16x256xf32>
    tpu.vector_store %arg8[%c0_27, %c0_28, %c0_29], %473 {strides = array<i32>} : memref<1x16x256xf32, #tpu.memory_space<vmem>>, vector<1x16x256xf32>,
    return
  }
  func.func @transform_0(%arg0: i32) -> (i32, i32, i32) {
    %c0_i32 = arith.constant 0 : i32
    %c0_i32_0 = arith.constant 0 : i32
    %c0_i32_1 = arith.constant 0 : i32
    return %arg0, %c0_i32, %c0_i32_0 : i32, i32, i32
  }
  func.func @transform_1(%arg0: i32) -> (i32, i32) {
    %c0_i32 = arith.constant 0 : i32
    %c0_i32_0 = arith.constant 0 : i32
    %c0_i32_1 = arith.constant 0 : i32
    return %c0_i32, %c0_i32_0 : i32, i32
  }
  func.func @transform_2(%arg0: i32) -> (i32, i32) {
    %c0_i32 = arith.constant 0 : i32
    %c0_i32_0 = arith.constant 0 : i32
    %c0_i32_1 = arith.constant 0 : i32
    return %c0_i32, %c0_i32_0 : i32, i32
  }
  func.func @transform_3(%arg0: i32) -> (i32, i32) {
    %c0_i32 = arith.constant 0 : i32
    %c0_i32_0 = arith.constant 0 : i32
    %c0_i32_1 = arith.constant 0 : i32
    return %c0_i32, %c0_i32_0 : i32, i32
  }
  func.func @transform_4(%arg0: i32) -> (i32, i32) {
    %c0_i32 = arith.constant 0 : i32
    %c0_i32_0 = arith.constant 0 : i32
    %c0_i32_1 = arith.constant 0 : i32
    return %c0_i32, %c0_i32_0 : i32, i32
  }
  func.func @transform_5(%arg0: i32) -> i32 {
    %c0_i32 = arith.constant 0 : i32
    %c0_i32_0 = arith.constant 0 : i32
    return %c0_i32 : i32
  }
  func.func @transform_6(%arg0: i32) -> i32 {
    %c0_i32 = arith.constant 0 : i32
    %c0_i32_0 = arith.constant 0 : i32
    return %c0_i32 : i32
  }
  func.func @transform_7(%arg0: i32) -> (i32, i32, i32) {
    %c0_i32 = arith.constant 0 : i32
    %c0_i32_0 = arith.constant 0 : i32
    %c0_i32_1 = arith.constant 0 : i32
    return %arg0, %c0_i32, %c0_i32_0 : i32, i32, i32
  }
}

</mosaic_0001>

<llo_original>
// kernel: tpu_custom_call.1
$region0: #{tpu_custom_call.1}
  #allocation0 [shape = 'u32[]', space=smem, size = 0x4, offset = 0x4, fixed_abs, tag = 'smem constant byte address 0x4 - core index']
  #allocation1 [shape = 'u32[144,128]{1,0:T(1,128)}', space=vmem, size = 0x12000, scoped, tag = 'internal scratch']
  #allocation2 [shape = 'f32[1]{0:T(128)S(6)}', space=smem, size = 0x200, scoped, tag = 'scoped memory for tpu_custom_call.1']
  %s0 = inlined_call_operand.hbm [shape: f32[2,16,256], index: 0, kind: input, shape index: {}]
  %s1 = inlined_call_operand.vmem [shape: f32[16,4], index: 1, kind: input, shape index: {}]
  %s2 = inlined_call_operand.hbm [shape: f32[4,16], index: 2, kind: input, shape index: {}]
  %s3 = inlined_call_operand.vmem [shape: f32[7,256], index: 3, kind: input, shape index: {}]
  %s4 = inlined_call_operand.vmem [shape: f32[7,256], index: 4, kind: input, shape index: {}]
  %s5 = inlined_call_operand.vmem [shape: f32[98], index: 5, kind: input, shape index: {}]
  %s6 = inlined_call_operand.<no memory space> [shape: f32[1], index: 6, kind: input, shape index: {}]
  %s7 = inlined_call_operand.hbm [shape: f32[2,16,256], index: 7, kind: output, shape index: {}]
  %s8 = sld [smem:[#allocation0]]
  $region73: #{tpu_custom_call.1} parent=0
    _
  %s10 = ssub.s32 1, %s8
  %s11 = scalar_select 0, %s10, %s8
  %12 = sst [smem:[#allocation2]] %s6
  $region1: #{tpu_custom_call.1} parent=0
    #allocation3 [shape = 'u8[32768]{0}', space=vmem, size = 0x8000, scoped, tag = 'input window, operand 0']
    #allocation4 [shape = 's32[2]{0}', space=sflag, size = 0x8, scoped, tag = 'scoped memory for tpu_custom_call.1']
    #allocation5 [shape = 's32[2]{0}', space=sflag, size = 0x8, scoped, tag = 'scoped memory for tpu_custom_call.1']
    #allocation6 [shape = 's32[2]{0}', space=sflag, size = 0x8, scoped, tag = 'scoped memory for tpu_custom_call.1']
    #allocation7 [shape = 'u8[2048]{0}', space=vmem, size = 0x800, scoped, tag = 'input window, operand 2, single buffered']
    #allocation8 [shape = 's32[1]{0}', space=sflag, size = 0x4, scoped, tag = 'scoped memory for tpu_custom_call.1']
    #allocation9 [shape = 'u8[512]{0}', space=smem, size = 0x200, scoped, tag = 'input window, operand 5, single buffered']
    #allocation10 [shape = 'u8[32768]{0}', space=vmem, size = 0x8000, scoped, tag = 'output window, operand 0']
    %13 = vsyncpa [#allocation4], 0
    %s14 = scalar_lea.sflag [#allocation4], 1
    %15 = vsyncpa %s14, 0
    %16 = vsyncpa [#allocation8], 0
    %17 = vsyncpa [#allocation6], 0
    %18 = vsyncpa [#allocation5], 0
    %s19 = scalar_lea.sflag [#allocation5], 1
    %20 = vsyncpa %s19, 0
    loop: start=0, step=1, limit=4
    $region2: #{tpu_custom_call.1} parent=1 // loop_pre_header
      _
    $region3: #{tpu_custom_call.1} parent=1 // loop_header
      %s22 = sphi 0, %s26
      %p23 = scmp.ge.s32.totalorder %s22, 4
      %s32 = sphi 0, %s34
      %s35 = sphi 0, %s32
      %s36 = sphi 0, %s35
      %s52 = sphi 0, %s36
      %s56 = sphi 0, %s56
      %s58 = sphi 0, %s56
      %s59 = sphi 0, %s58
      %s73 = sphi 0, %s59
      %s77 = sphi 0, %s77
      %s79 = sphi 0, %s77
      %s80 = sphi 0, %s79
      %s94 = sphi 0, %s80
      %s98 = sphi 0, %s98
      %s100 = sphi 0, %s98
      %s101 = sphi 0, %s100
      %s115 = sphi 0, %s101
      %s119 = sphi 0, %s119
      %s121 = sphi 0, %s119
      %s122 = sphi 0, %s121
      %s136 = sphi 0, %s122
      %s140 = sphi 0, %s140
      %s142 = sphi 0, %s140
      %s143 = sphi 0, %s142
      %s157 = sphi 0, %s143
      %s161 = sphi 0, %s161
      %s163 = sphi 0, %s161
      %s164 = sphi 0, %s163
      %s178 = sphi 0, %s164
      %s184 = sphi 0, %s186
      %s187 = sphi 0, %s184
      %s188 = sphi 0, %s187
      %s204 = sphi 0, %s188
    $region4: #{tpu_custom_call.1} parent=1 // loop_header_branch
      %25 = sbr.rel (%p23) target = $region8
    $region5: #{tpu_custom_call.1} parent=1 // loop_body
      %s27 = ssub.s32 %s22, 1
      %s28 = ssub.s32 %s22, 2
      %s29 = sadd.s32 %s22, 1
      %s30 = ssub.s32 %s22, %s29
      %p31 = scmp.eq.s32.totalorder %s30, 0
      %s33 = sadd.s32 %s32, 1
      %s34 = scalar_select %p31, %s32, %s33
      %p37 = pneg %p31
      %p38 = scmp.eq.s32.totalorder %s22, 1
      %p39 = por %p37, %p38
      %p40 = scmp.ne.s32.totalorder %s32, %s35
      %p41 = scmp.eq.s32.totalorder %s22, 0
      %p42 = por %p40, %p41
      %p43 = scmp.ne.s32.totalorder %s32, %s35
      %p44 = scmp.eq.s32.totalorder %s27, 1
      %p45 = por %p43, %p44
      %p46 = scmp.ne.s32.totalorder %s35, %s36
      %p47 = scmp.eq.s32.totalorder %s27, 0
      %p48 = por %p46, %p47
      %p49 = scmp.ne.s32.totalorder %s35, %s36
      %p50 = scmp.eq.s32.totalorder %s28, 1
      %p51 = por %p49, %p50
      %p53 = scmp.ne.s32.totalorder %s36, %s52
      %p54 = scmp.eq.s32.totalorder %s28, 0
      %p55 = por %p53, %p54
      %s57 = sadd.s32 %s56, 1
      %p60 = scmp.eq.s32.totalorder %s22, 1
      %p61 = scmp.ne.s32.totalorder %s56, %s58
      %p62 = scmp.eq.s32.totalorder %s22, 0
      %p63 = por %p61, %p62
      %p64 = scmp.ne.s32.totalorder %s56, %s58
      %p65 = scmp.eq.s32.totalorder %s27, 1
      %p66 = por %p64, %p65
      %p67 = scmp.ne.s32.totalorder %s58, %s59
      %p68 = scmp.eq.s32.totalorder %s27, 0
      %p69 = por %p67, %p68
      %p70 = scmp.ne.s32.totalorder %s58, %s59
      %p71 = scmp.eq.s32.totalorder %s28, 1
      %p72 = por %p70, %p71
      %p74 = scmp.ne.s32.totalorder %s59, %s73
      %p75 = scmp.eq.s32.totalorder %s28, 0
      %p76 = por %p74, %p75
      %s78 = sadd.s32 %s77, 1
      %p81 = scmp.eq.s32.totalorder %s22, 1
      %p82 = scmp.ne.s32.totalorder %s77, %s79
      %p83 = scmp.eq.s32.totalorder %s22, 0
      %p84 = por %p82, %p83
      %p85 = scmp.ne.s32.totalorder %s77, %s79
      %p86 = scmp.eq.s32.totalorder %s27, 1
      %p87 = por %p85, %p86
      %p88 = scmp.ne.s32.totalorder %s79, %s80
      %p89 = scmp.eq.s32.totalorder %s27, 0
      %p90 = por %p88, %p89
      %p91 = scmp.ne.s32.totalorder %s79, %s80
      %p92 = scmp.eq.s32.totalorder %s28, 1
      %p93 = por %p91, %p92
      %p95 = scmp.ne.s32.totalorder %s80, %s94
      %p96 = scmp.eq.s32.totalorder %s28, 0
      %p97 = por %p95, %p96
      %s99 = sadd.s32 %s98, 1
      %p102 = scmp.eq.s32.totalorder %s22, 1
      %p103 = scmp.ne.s32.totalorder %s98, %s100
      %p104 = scmp.eq.s32.totalorder %s22, 0
      %p105 = por %p103, %p104
      %p106 = scmp.ne.s32.totalorder %s98, %s100
      %p107 = scmp.eq.s32.totalorder %s27, 1
      %p108 = por %p106, %p107
      %p109 = scmp.ne.s32.totalorder %s100, %s101
      %p110 = scmp.eq.s32.totalorder %s27, 0
      %p111 = por %p109, %p110
      %p112 = scmp.ne.s32.totalorder %s100, %s101
      %p113 = scmp.eq.s32.totalorder %s28, 1
      %p114 = por %p112, %p113
      %p116 = scmp.ne.s32.totalorder %s101, %s115
      %p117 = scmp.eq.s32.totalorder %s28, 0
      %p118 = por %p116, %p117
      %s120 = sadd.s32 %s119, 1
      %p123 = scmp.eq.s32.totalorder %s22, 1
      %p124 = scmp.ne.s32.totalorder %s119, %s121
      %p125 = scmp.eq.s32.totalorder %s22, 0
      %p126 = por %p124, %p125
      %p127 = scmp.ne.s32.totalorder %s119, %s121
      %p128 = scmp.eq.s32.totalorder %s27, 1
      %p129 = por %p127, %p128
      %p130 = scmp.ne.s32.totalorder %s121, %s122
      %p131 = scmp.eq.s32.totalorder %s27, 0
      %p132 = por %p130, %p131
      %p133 = scmp.ne.s32.totalorder %s121, %s122
      %p134 = scmp.eq.s32.totalorder %s28, 1
      %p135 = por %p133, %p134
      %p137 = scmp.ne.s32.totalorder %s122, %s136
      %p138 = scmp.eq.s32.totalorder %s28, 0
      %p139 = por %p137, %p138
      %s141 = sadd.s32 %s140, 1
      %p144 = scmp.eq.s32.totalorder %s22, 1
      %p145 = scmp.ne.s32.totalorder %s140, %s142
      %p146 = scmp.eq.s32.totalorder %s22, 0
      %p147 = por %p145, %p146
      %p148 = scmp.ne.s32.totalorder %s140, %s142
      %p149 = scmp.eq.s32.totalorder %s27, 1
      %p150 = por %p148, %p149
      %p151 = scmp.ne.s32.totalorder %s142, %s143
      %p152 = scmp.eq.s32.totalorder %s27, 0
      %p153 = por %p151, %p152
      %p154 = scmp.ne.s32.totalorder %s142, %s143
      %p155 = scmp.eq.s32.totalorder %s28, 1
      %p156 = por %p154, %p155
      %p158 = scmp.ne.s32.totalorder %s143, %s157
      %p159 = scmp.eq.s32.totalorder %s28, 0
      %p160 = por %p158, %p159
      %s162 = sadd.s32 %s161, 1
      %p165 = scmp.eq.s32.totalorder %s22, 1
      %p166 = scmp.ne.s32.totalorder %s161, %s163
      %p167 = scmp.eq.s32.totalorder %s22, 0
      %p168 = por %p166, %p167
      %p169 = scmp.ne.s32.totalorder %s161, %s163
      %p170 = scmp.eq.s32.totalorder %s27, 1
      %p171 = por %p169, %p170
      %p172 = scmp.ne.s32.totalorder %s163, %s164
      %p173 = scmp.eq.s32.totalorder %s27, 0
      %p174 = por %p172, %p173
      %p175 = scmp.ne.s32.totalorder %s163, %s164
      %p176 = scmp.eq.s32.totalorder %s28, 1
      %p177 = por %p175, %p176
      %p179 = scmp.ne.s32.totalorder %s164, %s178
      %p180 = scmp.eq.s32.totalorder %s28, 0
      %p181 = por %p179, %p180
      %s182 = ssub.s32 %s22, %s29
      %p183 = scmp.eq.s32.totalorder %s182, 0
      %s185 = sadd.s32 %s184, 1
      %s186 = scalar_select %p183, %s184, %s185
      %p189 = pneg %p183
      %p190 = scmp.eq.s32.totalorder %s22, 1
      %p191 = por %p189, %p190
      %p192 = scmp.ne.s32.totalorder %s184, %s187
      %p193 = scmp.eq.s32.totalorder %s22, 0
      %p194 = por %p192, %p193
      %p195 = scmp.ne.s32.totalorder %s184, %s187
      %p196 = scmp.eq.s32.totalorder %s27, 1
      %p197 = por %p195, %p196
      %p198 = scmp.ne.s32.totalorder %s187, %s188
      %p199 = scmp.eq.s32.totalorder %s27, 0
      %p200 = por %p198, %p199
      %p201 = scmp.ne.s32.totalorder %s187, %s188
      %p202 = scmp.eq.s32.totalorder %s28, 1
      %p203 = por %p201, %p202
      %p205 = scmp.ne.s32.totalorder %s188, %s204
      %p206 = scmp.eq.s32.totalorder %s28, 0
      %p207 = por %p205, %p206
      %p208 = scmp.le.s32.totalorder 1, %s22
      %p209 = scmp.lt.s32.totalorder %s22, 3
      %p210 = pnand %p208, %p209
      %p211 = pneg %p210
      // Predicated region
      $region9: #{tpu_custom_call.1} parent=5 // pred_check
        _
      $region10: #{tpu_custom_call.1} parent=5 // pred_check_branch
        %213 = sbr.rel (%p210) target = $region12
      $region11: #{tpu_custom_call.1} parent=5 // pred_region
        %s214 = ssub.s32 %s22, 1
        // Predicated region
        $region13: #{tpu_custom_call.1} parent=11 // pred_check
          %p215 = pneg %p69
        $region14: #{tpu_custom_call.1} parent=11 // pred_check_branch
          %217 = sbr.rel (%p215) target = $region16
        $region15: #{tpu_custom_call.1} parent=11 // pred_region
          _
        $region16: #{tpu_custom_call.1} parent=11 // pred_fallthru
          _
        // Predicated region
        $region17: #{tpu_custom_call.1} parent=11 // pred_check
          %p218 = pneg %p90
        $region18: #{tpu_custom_call.1} parent=11 // pred_check_branch
          %220 = sbr.rel (%p218) target = $region20
        $region19: #{tpu_custom_call.1} parent=11 // pred_region
          %s222 = ssub.s32 64, 64
          %223 = vsyncadd [#allocation8], %s222
          %s225 = sshll.u32 [#allocation7], 4
          %s226 = int_to_ptr.vmem [resolvable:$true] %s225
          %228 = dma.hbm_to_vmem [thread:$0]  %s2, 64, %s226, [#allocation8]
        $region20: #{tpu_custom_call.1} parent=11 // pred_fallthru
          _
        // Predicated region
        $region21: #{tpu_custom_call.1} parent=11 // pred_check
          %p229 = pneg %p111
        $region22: #{tpu_custom_call.1} parent=11 // pred_check_branch
          %231 = sbr.rel (%p229) target = $region24
        $region23: #{tpu_custom_call.1} parent=11 // pred_region
          _
        $region24: #{tpu_custom_call.1} parent=11 // pred_fallthru
          _
        // Predicated region
        $region25: #{tpu_custom_call.1} parent=11 // pred_check
          %p232 = pneg %p132
        $region26: #{tpu_custom_call.1} parent=11 // pred_check_branch
          %234 = sbr.rel (%p232) target = $region28
        $region27: #{tpu_custom_call.1} parent=11 // pred_region
          _
        $region28: #{tpu_custom_call.1} parent=11 // pred_fallthru
          _
        // Predicated region
        $region29: #{tpu_custom_call.1} parent=11 // pred_check
          %p235 = pneg %p153
        $region30: #{tpu_custom_call.1} parent=11 // pred_check_branch
          %237 = sbr.rel (%p235) target = $region32
        $region31: #{tpu_custom_call.1} parent=11 // pred_region
          %s239 = ssub.s32 16, 16
          %240 = vsyncadd [#allocation6], %s239
          %s242 = sshll.u32 %s5, 4
          %s243 = int_to_ptr.vmem [resolvable:$true] %s242
          %245 = dma.vmem_to_smem %s243, 16, [#allocation9], [#allocation6]
        $region32: #{tpu_custom_call.1} parent=11 // pred_fallthru
          _
        // Predicated region
        $region33: #{tpu_custom_call.1} parent=11 // pred_check
          %p246 = pneg %p174
        $region34: #{tpu_custom_call.1} parent=11 // pred_check_branch
          %248 = sbr.rel (%p246) target = $region36
        $region35: #{tpu_custom_call.1} parent=11 // pred_region
          _
        $region36: #{tpu_custom_call.1} parent=11 // pred_fallthru
          _
      $region12: #{tpu_custom_call.1} parent=5 // pred_fallthru
        _
      %p249 = scmp.lt.s32.totalorder %s22, 2
      // Predicated region
      $region37: #{tpu_custom_call.1} parent=5 // pred_check
        %p250 = pneg %p249
      $region38: #{tpu_custom_call.1} parent=5 // pred_check_branch
        %252 = sbr.rel (%p250) target = $region40
      $region39: #{tpu_custom_call.1} parent=5 // pred_region
        // Predicated region
        $region41: #{tpu_custom_call.1} parent=39 // pred_check
          %p253 = pneg %p42
        $region42: #{tpu_custom_call.1} parent=39 // pred_check_branch
          %255 = sbr.rel (%p253) target = $region44
        $region43: #{tpu_custom_call.1} parent=39 // pred_region
          %s256 = sand.u32 %s32, 1
          %s257 = scalar_lea.sflag [#allocation4], %s256
          %s258 = sand.u32 %s32, 1
          %s259 = smul.addr %s258, 32
          %s260 = scalar_lea.vmem [#allocation3], %s259
          %s262 = ssub.s32 512, 512
          %263 = vsyncadd %s257, %s262
          %s264 = smul.addr %s22, 4
          %s265 = smul.addr %s264, 128
          %s266 = scalar_lea.hbm %s0, %s265
          %s267 = sshll.u32 %s260, 4
          %s268 = int_to_ptr.vmem [resolvable:$true] %s267
          %273 = dma.hbm_to_vmem [thread:$0]  %s266, 512, %s268, %s257, 256, 256, 16
        $region44: #{tpu_custom_call.1} parent=39 // pred_fallthru
          _
      $region40: #{tpu_custom_call.1} parent=5 // pred_fallthru
        _
      %p274 = scmp.le.s32.totalorder 1, %s22
      %p275 = scmp.lt.s32.totalorder %s22, 3
      %p276 = pnand %p274, %p275
      %p277 = pneg %p276
      // Predicated region
      $region45: #{tpu_custom_call.1} parent=5 // pred_check
        _
      $region46: #{tpu_custom_call.1} parent=5 // pred_check_branch
        %279 = sbr.rel (%p276) target = $region48
      $region47: #{tpu_custom_call.1} parent=5 // pred_region
        %s280 = ssub.s32 %s22, 1
        %s281 = sand.u32 %s35, 1
        %s282 = scalar_lea.sflag [#allocation4], %s281
        %s283 = sand.u32 %s35, 1
        %s284 = smul.addr %s283, 32
        %s285 = scalar_lea.vmem [#allocation3], %s284
        // Predicated region
        $region49: #{tpu_custom_call.1} parent=47 // pred_check
          %p286 = pneg %p48
        $region50: #{tpu_custom_call.1} parent=47 // pred_check_branch
          %288 = sbr.rel (%p286) target = $region52
        $region51: #{tpu_custom_call.1} parent=47 // pred_region
          %289 = dma.done %s282, 512
        $region52: #{tpu_custom_call.1} parent=47 // pred_fallthru
          _
        // Predicated region
        $region53: #{tpu_custom_call.1} parent=47 // pred_check
          %p290 = pneg %p90
        $region54: #{tpu_custom_call.1} parent=47 // pred_check_branch
          %292 = sbr.rel (%p290) target = $region56
        $region55: #{tpu_custom_call.1} parent=47 // pred_region
          %293 = dma.done [#allocation8], 64
        $region56: #{tpu_custom_call.1} parent=47 // pred_fallthru
          _
        // Predicated region
        $region57: #{tpu_custom_call.1} parent=47 // pred_check
          %p294 = pneg %p153
        $region58: #{tpu_custom_call.1} parent=47 // pred_check_branch
          %296 = sbr.rel (%p294) target = $region60
        $region59: #{tpu_custom_call.1} parent=47 // pred_region
          %297 = dma.done [#allocation6], 16
        $region60: #{tpu_custom_call.1} parent=47 // pred_fallthru
          _
        %298 = sfence
        %s299 = sand.u32 %s35, 1
        %s300 = scalar_lea.sflag [#allocation4], %s299
        %s301 = sand.u32 %s35, 1
        %s302 = smul.addr %s301, 32
        %s303 = scalar_lea.vmem [#allocation3], %s302
        %p304 = pneg %p48
        %p305 = pneg %p45
        %p306 = pneg %p69
        %p307 = pneg %p66
        %p308 = pneg %p90
        %p309 = pneg %p87
        %p310 = pneg %p111
        %p311 = pneg %p108
        %p312 = pneg %p132
        %p313 = pneg %p129
        %p314 = pneg %p153
        %p315 = pneg %p150
        %p316 = pneg %p174
        %p317 = pneg %p171
        %p318 = pneg %p200
        %p319 = pneg %p197
        %s320 = sand.u32 %s187, 1
        %s321 = scalar_lea.sflag [#allocation5], %s320
        %s322 = sand.u32 %s187, 1
        %s323 = smul.addr %s322, 32
        %s324 = scalar_lea.vmem [#allocation10], %s323
        %v325 = vld [vmem:[%s285] sm:$0xff]
        %v326 = vld [vmem:[%s285 + $0x8] sm:$0xff]
        %v327 = vld [vmem:[%s285 + $0x10] sm:$0xff]
        %v328 = vld [vmem:[%s285 + $0x18] sm:$0xff]
        %v329 = vadd.f32 %v325, %v326
        %330 = vadd.xlane.f32.xlu0 %v329
        %v331 = vpop.xlane.xlu0 %330
        %v332 = vadd.f32 %v327, %v328
        %333 = vadd.xlane.f32.xlu0 %v332
        %v334 = vpop.xlane.xlu0 %333
        %v335 = vrcp.pop 256.0
        %v336 = vmul.f32 %v331, %v335
        %v337 = vmul.f32 %v334, %v335
        %v338 = vld [vmem:[%s1] sm:$0xff]
        %v339 = vld [vmem:[%s1 + $0x8] sm:$0xff]
        %v342 = vlaneseq
        %v343 = vand.u32 %v342, 127
        %v344 = vlaneseq
        %v345 = vshrl.u32 %v344, 7
        %v346 = vsub.s32 %v343, %v345
        %v347 = vrot.slane %v336, %v346
        %v348 = vadd.s32 %v343, 4294967288
        %v349 = vlaneseq
        %v350 = vshrl.u32 %v349, 7
        %v351 = vsub.s32 %v348, %v350
        %v352 = vrot.slane %v337, %v351
        %vm353 = vcmask 130112
        %v354 = vsel %vm353, %v352, %v347
        %vm355 = vcmask 130048
        %v356 = vsel %vm355, %v354, 0
        %358 = vmatprep.subr.mxu0 0.0
        %359 = vmatpush1.msra.mxu0 %v338
        %360 = vmatprep.subr.mxu0 0.0
        %361 = vmatpush1.msra.mxu0 %v339
        %362 = vmatprep.subr.mxu0 0.0
        %363 = vmatpush1.msra.mxu0 0.0
        %364 = vmatprep.subr.mxu0 0.0
        %365 = vmatpush1.msra.mxu0 0.0
        %366 = vmatprep.subr.mxu0 0.0
        %367 = vmatpush1.msra.mxu0 0.0
        %368 = vmatprep.subr.mxu0 0.0
        %369 = vmatpush1.msra.mxu0 0.0
        %370 = vmatprep.subr.mxu0 0.0
        %371 = vmatpush1.msra.mxu0 0.0
        %372 = vmatprep.subr.mxu0 0.0
        %373 = vmatpush1.msra.mxu0 0.0
        %374 = vmatprep.subr.mxu0 0.0
        %375 = vmatpush1.msra.mxu0 0.0
        %376 = vmatprep.subr.mxu0 0.0
        %377 = vmatpush1.msra.mxu0 0.0
        %378 = vmatprep.subr.mxu0 0.0
        %379 = vmatpush1.msra.mxu0 0.0
        %380 = vmatprep.subr.mxu0 0.0
        %381 = vmatpush1.msra.mxu0 0.0
        %382 = vmatprep.subr.mxu0 0.0
        %383 = vmatpush1.msra.mxu0 0.0
        %384 = vmatprep.subr.mxu0 0.0
        %385 = vmatpush1.msra.mxu0 0.0
        %386 = vmatprep.subr.mxu0 0.0
        %387 = vmatpush1.msra.mxu0 0.0
        %388 = vmatprep.subr.mxu0 0.0
        %389 = vmatpush1.msra.mxu0 0.0
        %390 = vmatprep.subr.mxu0 0.0
        %391 = vmatpush1.msra.mxu0 0.0
        %392 = vmatprep.subr.mxu0 0.0
        %393 = vmatpush1.msra.mxu0 0.0
        %394 = vmatprep.subr.mxu0 0.0
        %395 = vmatpush1.msra.mxu0 0.0
        %396 = vmatprep.subr.mxu0 0.0
        %397 = vmatpush1.msra.mxu0 0.0
        %398 = vmatprep.subr.mxu0 0.0
        %399 = vmatpush1.msra.mxu0 0.0
        %400 = vmatprep.subr.mxu0 0.0
        %401 = vmatpush1.msra.mxu0 0.0
        %402 = vmatprep.subr.mxu0 0.0
        %403 = vmatpush1.msra.mxu0 0.0
        %404 = vmatprep.subr.mxu0 0.0
        %405 = vmatpush1.msra.mxu0 0.0
        %406 = vmatprep.subr.mxu0 0.0
        %407 = vmatpush1.msra.mxu0 0.0
        %408 = vmatprep.subr.mxu0 0.0
        %409 = vmatpush1.msra.mxu0 0.0
        %410 = vmatprep.subr.mxu0 0.0
        %411 = vmatpush1.msra.mxu0 0.0
        %412 = vmatprep.subr.mxu0 0.0
        %413 = vmatpush1.msra.mxu0 0.0
        %414 = vmatprep.subr.mxu0 0.0
        %415 = vmatpush1.msra.mxu0 0.0
        %416 = vmatprep.subr.mxu0 0.0
        %417 = vmatpush1.msra.mxu0 0.0
        %418 = vmatprep.subr.mxu0 0.0
        %419 = vmatpush1.msra.mxu0 0.0
        %420 = vmatprep.subr.mxu0 0.0
        %421 = vmatpush1.msra.mxu0 0.0
        %422 = vmatprep.mubr.f32.mxu0 0.0
        %423 = vmatmul.mubr.f32.gmra.mrb[0].mxu0 %v356
        %v424 = vpop.f32.mrb[0].mxu0
        %v425 = vadd.f32 0.0, %v424
        %v426 = vpop.f32.mrb[0].mxu0
        %427 = vdwg.mxu0
        %v428 = vmax.f32 %v425, 0.0
        %v429 = vld [vmem:[#allocation7] sm:$0xf]
        %vm430 = vcmask 31744
        %v432 = vsel %vm430, %v428, 0
        %vm434 = vcmask 1043456
        %v436 = vsel %vm434, %v429, 0
        %438 = vmatprep.subr.mxu0 0.0
        %439 = vmatpush1.msra.mxu0 %v436
        %440 = vmatprep.subr.mxu0 0.0
        %441 = vmatpush1.msra.mxu0 0.0
        %442 = vmatprep.subr.mxu0 0.0
        %443 = vmatpush1.msra.mxu0 0.0
        %444 = vmatprep.subr.mxu0 0.0
        %445 = vmatpush1.msra.mxu0 0.0
        %446 = vmatprep.subr.mxu0 0.0
        %447 = vmatpush1.msra.mxu0 0.0
        %448 = vmatprep.subr.mxu0 0.0
        %449 = vmatpush1.msra.mxu0 0.0
        %450 = vmatprep.subr.mxu0 0.0
        %451 = vmatpush1.msra.mxu0 0.0
        %452 = vmatprep.subr.mxu0 0.0
        %453 = vmatpush1.msra.mxu0 0.0
        %454 = vmatprep.subr.mxu0 0.0
        %455 = vmatpush1.msra.mxu0 0.0
        %456 = vmatprep.subr.mxu0 0.0
        %457 = vmatpush1.msra.mxu0 0.0
        %458 = vmatprep.subr.mxu0 0.0
        %459 = vmatpush1.msra.mxu0 0.0
        %460 = vmatprep.subr.mxu0 0.0
        %461 = vmatpush1.msra.mxu0 0.0
        %462 = vmatprep.subr.mxu0 0.0
        %463 = vmatpush1.msra.mxu0 0.0
        %464 = vmatprep.subr.mxu0 0.0
        %465 = vmatpush1.msra.mxu0 0.0
        %466 = vmatprep.subr.mxu0 0.0
        %467 = vmatpush1.msra.mxu0 0.0
        %468 = vmatprep.subr.mxu0 0.0
        %469 = vmatpush1.msra.mxu0 0.0
        %470 = vmatprep.subr.mxu0 0.0
        %471 = vmatpush1.msra.mxu0 0.0
        %472 = vmatprep.subr.mxu0 0.0
        %473 = vmatpush1.msra.mxu0 0.0
        %474 = vmatprep.subr.mxu0 0.0
        %475 = vmatpush1.msra.mxu0 0.0
        %476 = vmatprep.subr.mxu0 0.0
        %477 = vmatpush1.msra.mxu0 0.0
        %478 = vmatprep.subr.mxu0 0.0
        %479 = vmatpush1.msra.mxu0 0.0
        %480 = vmatprep.subr.mxu0 0.0
        %481 = vmatpush1.msra.mxu0 0.0
        %482 = vmatprep.subr.mxu0 0.0
        %483 = vmatpush1.msra.mxu0 0.0
        %484 = vmatprep.subr.mxu0 0.0
        %485 = vmatpush1.msra.mxu0 0.0
        %486 = vmatprep.subr.mxu0 0.0
        %487 = vmatpush1.msra.mxu0 0.0
        %488 = vmatprep.subr.mxu0 0.0
        %489 = vmatpush1.msra.mxu0 0.0
        %490 = vmatprep.subr.mxu0 0.0
        %491 = vmatpush1.msra.mxu0 0.0
        %492 = vmatprep.subr.mxu0 0.0
        %493 = vmatpush1.msra.mxu0 0.0
        %494 = vmatprep.subr.mxu0 0.0
        %495 = vmatpush1.msra.mxu0 0.0
        %496 = vmatprep.subr.mxu0 0.0
        %497 = vmatpush1.msra.mxu0 0.0
        %498 = vmatprep.subr.mxu0 0.0
        %499 = vmatpush1.msra.mxu0 0.0
        %500 = vmatprep.subr.mxu0 0.0
        %501 = vmatpush1.msra.mxu0 0.0
        %502 = vmatprep.mubr.f32.mxu0 0.0
        %503 = vmatmul.mubr.f32.gmra.mrb[0].mxu0 %v432
        %v504 = vpop.f32.mrb[0].mxu0
        %v505 = vadd.f32 0.0, %v504
        %v506 = vpop.f32.mrb[0].mxu0
        %507 = vdwg.mxu0
        %v508 = vxor.u32 %v505, 2147483648
        %v509 = vmul.f32 %v508, 1.442695
        %v510 = vpow.pop %v509
        %v511 = vadd.f32 %v510, 1.0
        %v512 = vrcp.pop %v511
        %v513 = vmul.f32 1.0, %v512
        %v514 = vmax.f32 %v325, %v327
        %v515 = vrot.slane %v514, 4
        %v516 = vmax.f32 %v514, %v515
        %v517 = vrot.slane %v516, 2
        %v518 = vmax.f32 %v516, %v517
        %v519 = vrot.slane %v518, 1
        %v520 = vmax.f32 %v518, %v519
        %v521 = vmax.f32 %v326, %v328
        %v522 = vrot.slane %v521, 4
        %v523 = vmax.f32 %v521, %v522
        %v524 = vrot.slane %v523, 2
        %v525 = vmax.f32 %v523, %v524
        %v526 = vrot.slane %v525, 1
        %v527 = vmax.f32 %v525, %v526
        %v528 = vadd.f32 %v325, %v327
        %v529 = vrot.slane %v528, 4
        %v530 = vadd.f32 %v528, %v529
        %v531 = vrot.slane %v530, 2
        %v532 = vadd.f32 %v530, %v531
        %v533 = vrot.slane %v532, 1
        %v534 = vadd.f32 %v532, %v533
        %v535 = vadd.f32 %v326, %v328
        %v536 = vrot.slane %v535, 4
        %v537 = vadd.f32 %v535, %v536
        %v538 = vrot.slane %v537, 2
        %v539 = vadd.f32 %v537, %v538
        %v540 = vrot.slane %v539, 1
        %v541 = vadd.f32 %v539, %v540
        %v542 = vrcp.pop 16.0
        %v543 = vmul.f32 %v534, %v542
        %v544 = vmul.f32 %v541, %v542
        %v545 = vld [vmem:[%s3] sm:$0x7f]
        %v546 = vld [vmem:[%s3 + $0x8] sm:$0x7f]
        %v547 = vld [vmem:[%s4] sm:$0x7f]
        %v548 = vld [vmem:[%s4 + $0x8] sm:$0x7f]
        %549 = vrot.lane.b32.xlu0 %v520, 3
        %v550 = vpop.permute.xlu0 %549
        %551 = vrot.lane.b32.xlu0 %v527, 3
        %v552 = vpop.permute.xlu0 %551
        %vm553 = vcmp.lt.s32.totalorder %v343, 3
        %v554 = vsel %vm553, %v550, %v552
        %v555 = vsel %vm553, %v552, %v550
        %v556 = vmul.f32 %v555, %v545
        %v557 = vmul.f32 %v554, %v546
        %558 = vrot.lane.b32.xlu0 %v543, 3
        %v559 = vpop.permute.xlu0 %558
        %560 = vrot.lane.b32.xlu0 %v544, 3
        %v561 = vpop.permute.xlu0 %560
        %v562 = vsel %vm553, %v559, %v561
        %v563 = vsel %vm553, %v561, %v559
        %v564 = vmul.f32 %v563, %v545
        %v565 = vmul.f32 %v562, %v546
        %566 = vrot.lane.b32.xlu0 %v520, 2
        %v567 = vpop.permute.xlu0 %566
        %568 = vrot.lane.b32.xlu0 %v527, 2
        %v569 = vpop.permute.xlu0 %568
        %vm570 = vcmp.lt.s32.totalorder %v343, 2
        %v571 = vsel %vm570, %v567, %v569
        %v572 = vsel %vm570, %v569, %v567
        %v575 = vrot.slane %v545, 1
        %v576 = vrot.slane %v546, 1
        %v579 = vmul.f32 %v572, %v575
        %v580 = vmul.f32 %v571, %v576
        %581 = vrot.lane.b32.xlu0 %v543, 2
        %v582 = vpop.permute.xlu0 %581
        %583 = vrot.lane.b32.xlu0 %v544, 2
        %v584 = vpop.permute.xlu0 %583
        %v585 = vsel %vm570, %v582, %v584
        %v586 = vsel %vm570, %v584, %v582
        %v587 = vmul.f32 %v586, %v575
        %v588 = vmul.f32 %v585, %v576
        %589 = vrot.lane.b32.xlu0 %v520, 1
        %v590 = vpop.permute.xlu0 %589
        %591 = vrot.lane.b32.xlu0 %v527, 1
        %v592 = vpop.permute.xlu0 %591
        %vm593 = vcmp.lt.s32.totalorder %v343, 1
        %v594 = vsel %vm593, %v590, %v592
        %v595 = vsel %vm593, %v592, %v590
        %v596 = vrot.slane %v545, 2
        %v597 = vrot.slane %v546, 2
        %v600 = vmul.f32 %v595, %v596
        %v601 = vmul.f32 %v594, %v597
        %602 = vrot.lane.b32.xlu0 %v543, 1
        %v603 = vpop.permute.xlu0 %602
        %604 = vrot.lane.b32.xlu0 %v544, 1
        %v605 = vpop.permute.xlu0 %604
        %v606 = vsel %vm593, %v603, %v605
        %v607 = vsel %vm593, %v605, %v603
        %v608 = vmul.f32 %v607, %v596
        %v609 = vmul.f32 %v606, %v597
        %610 = vrot.lane.b32.xlu0 %v520, 127
        %v611 = vpop.permute.xlu0 %610
        %612 = vrot.lane.b32.xlu0 %v527, 127
        %v613 = vpop.permute.xlu0 %612
        %vm614 = vcmp.lt.s32.totalorder %v343, 127
        %v615 = vsel %vm614, %v611, %v613
        %v616 = vsel %vm614, %v613, %v611
        %v617 = vrot.slane %v545, 4
        %v618 = vrot.slane %v546, 4
        %v621 = vmul.f32 %v615, %v617
        %v622 = vmul.f32 %v616, %v618
        %623 = vrot.lane.b32.xlu0 %v543, 127
        %v624 = vpop.permute.xlu0 %623
        %625 = vrot.lane.b32.xlu0 %v544, 127
        %v626 = vpop.permute.xlu0 %625
        %v627 = vsel %vm614, %v624, %v626
        %v628 = vsel %vm614, %v626, %v624
        %v629 = vmul.f32 %v627, %v617
        %v630 = vmul.f32 %v628, %v618
        %631 = vrot.lane.b32.xlu0 %v520, 126
        %v632 = vpop.permute.xlu0 %631
        %633 = vrot.lane.b32.xlu0 %v527, 126
        %v634 = vpop.permute.xlu0 %633
        %vm635 = vcmp.lt.s32.totalorder %v343, 126
        %v636 = vsel %vm635, %v632, %v634
        %v637 = vsel %vm635, %v634, %v632
        %v638 = vrot.slane %v545, 5
        %v639 = vrot.slane %v546, 5
        %v642 = vmul.f32 %v636, %v638
        %v643 = vmul.f32 %v637, %v639
        %644 = vrot.lane.b32.xlu0 %v543, 126
        %v645 = vpop.permute.xlu0 %644
        %646 = vrot.lane.b32.xlu0 %v544, 126
        %v647 = vpop.permute.xlu0 %646
        %v648 = vsel %vm635, %v645, %v647
        %v649 = vsel %vm635, %v647, %v645
        %v650 = vmul.f32 %v648, %v638
        %v651 = vmul.f32 %v649, %v639
        %652 = vrot.lane.b32.xlu0 %v520, 125
        %v653 = vpop.permute.xlu0 %652
        %654 = vrot.lane.b32.xlu0 %v527, 125
        %v655 = vpop.permute.xlu0 %654
        %vm656 = vcmp.lt.s32.totalorder %v343, 125
        %v657 = vsel %vm656, %v653, %v655
        %v658 = vsel %vm656, %v655, %v653
        %v659 = vrot.slane %v545, 6
        %v660 = vrot.slane %v546, 6
        %v663 = vmul.f32 %v657, %v659
        %v664 = vmul.f32 %v658, %v660
        %665 = vrot.lane.b32.xlu0 %v543, 125
        %v666 = vpop.permute.xlu0 %665
        %667 = vrot.lane.b32.xlu0 %v544, 125
        %v668 = vpop.permute.xlu0 %667
        %v669 = vsel %vm656, %v666, %v668
        %v670 = vsel %vm656, %v668, %v666
        %v671 = vmul.f32 %v669, %v659
        %v672 = vmul.f32 %v670, %v660
        %s673 = sld [smem:[#allocation9]]
        %v674 = vstv %s673
        %v675 = vmul.f32 %v556, %v674
        %v676 = vmul.f32 %v557, %v674
        %s677 = sld [smem:[#allocation9 + $0x31]]
        %v678 = vstv %s677
        %v679 = vmul.f32 %v564, %v678
        %v680 = vmul.f32 %v565, %v678
        %s681 = sld [smem:[#allocation9 + $0x1]]
        %v682 = vstv %s681
        %v683 = vmul.f32 %v579, %v682
        %v684 = vmul.f32 %v580, %v682
        %v685 = vadd.f32 %v675, %v683
        %v686 = vadd.f32 %v676, %v684
        %s687 = sld [smem:[#allocation9 + $0x32]]
        %v688 = vstv %s687
        %v689 = vmul.f32 %v587, %v688
        %v690 = vmul.f32 %v588, %v688
        %v691 = vadd.f32 %v679, %v689
        %v692 = vadd.f32 %v680, %v690
        %s693 = sld [smem:[#allocation9 + $0x2]]
        %v694 = vstv %s693
        %v695 = vmul.f32 %v600, %v694
        %v696 = vmul.f32 %v601, %v694
        %v697 = vadd.f32 %v685, %v695
        %v698 = vadd.f32 %v686, %v696
        %s699 = sld [smem:[#allocation9 + $0x33]]
        %v700 = vstv %s699
        %v701 = vmul.f32 %v608, %v700
        %v702 = vmul.f32 %v609, %v700
        %v703 = vadd.f32 %v691, %v701
        %v704 = vadd.f32 %v692, %v702
        %s705 = sld [smem:[#allocation9 + $0x3]]
        %v706 = vstv %s705
        %v707 = vmul.f32 %v520, %v706
        %v708 = vmul.f32 %v527, %v706
        %v709 = vadd.f32 %v697, %v707
        %v710 = vadd.f32 %v698, %v708
        %s711 = sld [smem:[#allocation9 + $0x34]]
        %v712 = vstv %s711
        %v713 = vmul.f32 %v543, %v712
        %v714 = vmul.f32 %v544, %v712
        %v715 = vadd.f32 %v703, %v713
        %v716 = vadd.f32 %v704, %v714
        %s717 = sld [smem:[#allocation9 + $0x4]]
        %v718 = vstv %s717
        %v719 = vmul.f32 %v621, %v718
        %v720 = vmul.f32 %v622, %v718
        %v721 = vadd.f32 %v709, %v719
        %v722 = vadd.f32 %v710, %v720
        %s723 = sld [smem:[#allocation9 + $0x35]]
        %v724 = vstv %s723
        %v725 = vmul.f32 %v629, %v724
        %v726 = vmul.f32 %v630, %v724
        %v727 = vadd.f32 %v715, %v725
        %v728 = vadd.f32 %v716, %v726
        %s729 = sld [smem:[#allocation9 + $0x5]]
        %v730 = vstv %s729
        %v731 = vmul.f32 %v642, %v730
        %v732 = vmul.f32 %v643, %v730
        %v733 = vadd.f32 %v721, %v731
        %v734 = vadd.f32 %v722, %v732
        %s735 = sld [smem:[#allocation9 + $0x36]]
        %v736 = vstv %s735
        %v737 = vmul.f32 %v650, %v736
        %v738 = vmul.f32 %v651, %v736
        %v739 = vadd.f32 %v727, %v737
        %v740 = vadd.f32 %v728, %v738
        %s741 = sld [smem:[#allocation9 + $0x6]]
        %v742 = vstv %s741
        %v743 = vmul.f32 %v663, %v742
        %v744 = vmul.f32 %v664, %v742
        %v745 = vadd.f32 %v733, %v743
        %v746 = vadd.f32 %v734, %v744
        %s747 = sld [smem:[#allocation9 + $0x37]]
        %v748 = vstv %s747
        %v749 = vmul.f32 %v671, %v748
        %v750 = vmul.f32 %v672, %v748
        %v751 = vadd.f32 %v739, %v749
        %v752 = vadd.f32 %v740, %v750
        %v753 = vadd.f32 %v745, %v751
        %v754 = vadd.f32 %v746, %v752
        %755 = vrot.lane.b32.xlu0 %v753, 48
        %v756 = vpop.permute.xlu0 %755
        %757 = vrot.lane.b32.xlu0 %v754, 48
        %v758 = vpop.permute.xlu0 %757
        %vm759 = vcmp.lt.s32.totalorder %v343, 48
        %v760 = vsel %vm759, %v756, %v758
        %v761 = vsel %vm759, %v758, %v756
        %v762 = vmul.f32 %v761, %v547
        %v763 = vmul.f32 %v760, %v548
        %s764 = sld [smem:[#allocation9 + $0x7]]
        %v765 = vstv %s764
        %v766 = vmul.f32 %v556, %v765
        %v767 = vmul.f32 %v557, %v765
        %s768 = sld [smem:[#allocation9 + $0x38]]
        %v769 = vstv %s768
        %v770 = vmul.f32 %v564, %v769
        %v771 = vmul.f32 %v565, %v769
        %s772 = sld [smem:[#allocation9 + $0x8]]
        %v773 = vstv %s772
        %v774 = vmul.f32 %v579, %v773
        %v775 = vmul.f32 %v580, %v773
        %v776 = vadd.f32 %v766, %v774
        %v777 = vadd.f32 %v767, %v775
        %s778 = sld [smem:[#allocation9 + $0x39]]
        %v779 = vstv %s778
        %v780 = vmul.f32 %v587, %v779
        %v781 = vmul.f32 %v588, %v779
        %v782 = vadd.f32 %v770, %v780
        %v783 = vadd.f32 %v771, %v781
        %s784 = sld [smem:[#allocation9 + $0x9]]
        %v785 = vstv %s784
        %v786 = vmul.f32 %v600, %v785
        %v787 = vmul.f32 %v601, %v785
        %v788 = vadd.f32 %v776, %v786
        %v789 = vadd.f32 %v777, %v787
        %s790 = sld [smem:[#allocation9 + $0x3a]]
        %v791 = vstv %s790
        %v792 = vmul.f32 %v608, %v791
        %v793 = vmul.f32 %v609, %v791
        %v794 = vadd.f32 %v782, %v792
        %v795 = vadd.f32 %v783, %v793
        %s796 = sld [smem:[#allocation9 + $0xa]]
        %v797 = vstv %s796
        %v798 = vmul.f32 %v520, %v797
        %v799 = vmul.f32 %v527, %v797
        %v800 = vadd.f32 %v788, %v798
        %v801 = vadd.f32 %v789, %v799
        %s802 = sld [smem:[#allocation9 + $0x3b]]
        %v803 = vstv %s802
        %v804 = vmul.f32 %v543, %v803
        %v805 = vmul.f32 %v544, %v803
        %v806 = vadd.f32 %v794, %v804
        %v807 = vadd.f32 %v795, %v805
        %s808 = sld [smem:[#allocation9 + $0xb]]
        %v809 = vstv %s808
        %v810 = vmul.f32 %v621, %v809
        %v811 = vmul.f32 %v622, %v809
        %v812 = vadd.f32 %v800, %v810
        %v813 = vadd.f32 %v801, %v811
        %s814 = sld [smem:[#allocation9 + $0x3c]]
        %v815 = vstv %s814
        %v816 = vmul.f32 %v629, %v815
        %v817 = vmul.f32 %v630, %v815
        %v818 = vadd.f32 %v806, %v816
        %v819 = vadd.f32 %v807, %v817
        %s820 = sld [smem:[#allocation9 + $0xc]]
        %v821 = vstv %s820
        %v822 = vmul.f32 %v642, %v821
        %v823 = vmul.f32 %v643, %v821
        %v824 = vadd.f32 %v812, %v822
        %v825 = vadd.f32 %v813, %v823
        %s826 = sld [smem:[#allocation9 + $0x3d]]
        %v827 = vstv %s826
        %v828 = vmul.f32 %v650, %v827
        %v829 = vmul.f32 %v651, %v827
        %v830 = vadd.f32 %v818, %v828
        %v831 = vadd.f32 %v819, %v829
        %s832 = sld [smem:[#allocation9 + $0xd]]
        %v833 = vstv %s832
        %v834 = vmul.f32 %v663, %v833
        %v835 = vmul.f32 %v664, %v833
        %v836 = vadd.f32 %v824, %v834
        %v837 = vadd.f32 %v825, %v835
        %s838 = sld [smem:[#allocation9 + $0x3e]]
        %v839 = vstv %s838
        %v840 = vmul.f32 %v671, %v839
        %v841 = vmul.f32 %v672, %v839
        %v842 = vadd.f32 %v830, %v840
        %v843 = vadd.f32 %v831, %v841
        %v844 = vadd.f32 %v836, %v842
        %v845 = vadd.f32 %v837, %v843
        %846 = vrot.lane.b32.xlu0 %v844, 32
        %v847 = vpop.permute.xlu0 %846
        %848 = vrot.lane.b32.xlu0 %v845, 32
        %v849 = vpop.permute.xlu0 %848
        %vm850 = vcmp.lt.s32.totalorder %v343, 32
        %v851 = vsel %vm850, %v847, %v849
        %v852 = vsel %vm850, %v849, %v847
        %v855 = vrot.slane %v547, 1
        %v856 = vrot.slane %v548, 1
        %v859 = vmul.f32 %v852, %v855
        %v860 = vmul.f32 %v851, %v856
        %v861 = vadd.f32 %v762, %v859
        %v862 = vadd.f32 %v763, %v860
        %s863 = sld [smem:[#allocation9 + $0xe]]
        %v864 = vstv %s863
        %v865 = vmul.f32 %v556, %v864
        %v866 = vmul.f32 %v557, %v864
        %s867 = sld [smem:[#allocation9 + $0x3f]]
        %v868 = vstv %s867
        %v869 = vmul.f32 %v564, %v868
        %v870 = vmul.f32 %v565, %v868
        %s871 = sld [smem:[#allocation9 + $0xf]]
        %v872 = vstv %s871
        %v873 = vmul.f32 %v579, %v872
        %v874 = vmul.f32 %v580, %v872
        %v875 = vadd.f32 %v865, %v873
        %v876 = vadd.f32 %v866, %v874
        %s877 = sld [smem:[#allocation9 + $0x40]]
        %v878 = vstv %s877
        %v879 = vmul.f32 %v587, %v878
        %v880 = vmul.f32 %v588, %v878
        %v881 = vadd.f32 %v869, %v879
        %v882 = vadd.f32 %v870, %v880
        %s883 = sld [smem:[#allocation9 + $0x10]]
        %v884 = vstv %s883
        %v885 = vmul.f32 %v600, %v884
        %v886 = vmul.f32 %v601, %v884
        %v887 = vadd.f32 %v875, %v885
        %v888 = vadd.f32 %v876, %v886
        %s889 = sld [smem:[#allocation9 + $0x41]]
        %v890 = vstv %s889
        %v891 = vmul.f32 %v608, %v890
        %v892 = vmul.f32 %v609, %v890
        %v893 = vadd.f32 %v881, %v891
        %v894 = vadd.f32 %v882, %v892
        %s895 = sld [smem:[#allocation9 + $0x11]]
        %v896 = vstv %s895
        %v897 = vmul.f32 %v520, %v896
        %v898 = vmul.f32 %v527, %v896
        %v899 = vadd.f32 %v887, %v897
        %v900 = vadd.f32 %v888, %v898
        %s901 = sld [smem:[#allocation9 + $0x42]]
        %v902 = vstv %s901
        %v903 = vmul.f32 %v543, %v902
        %v904 = vmul.f32 %v544, %v902
        %v905 = vadd.f32 %v893, %v903
        %v906 = vadd.f32 %v894, %v904
        %s907 = sld [smem:[#allocation9 + $0x12]]
        %v908 = vstv %s907
        %v909 = vmul.f32 %v621, %v908
        %v910 = vmul.f32 %v622, %v908
        %v911 = vadd.f32 %v899, %v909
        %v912 = vadd.f32 %v900, %v910
        %s913 = sld [smem:[#allocation9 + $0x43]]
        %v914 = vstv %s913
        %v915 = vmul.f32 %v629, %v914
        %v916 = vmul.f32 %v630, %v914
        %v917 = vadd.f32 %v905, %v915
        %v918 = vadd.f32 %v906, %v916
        %s919 = sld [smem:[#allocation9 + $0x13]]
        %v920 = vstv %s919
        %v921 = vmul.f32 %v642, %v920
        %v922 = vmul.f32 %v643, %v920
        %v923 = vadd.f32 %v911, %v921
        %v924 = vadd.f32 %v912, %v922
        %s925 = sld [smem:[#allocation9 + $0x44]]
        %v926 = vstv %s925
        %v927 = vmul.f32 %v650, %v926
        %v928 = vmul.f32 %v651, %v926
        %v929 = vadd.f32 %v917, %v927
        %v930 = vadd.f32 %v918, %v928
        %s931 = sld [smem:[#allocation9 + $0x14]]
        %v932 = vstv %s931
        %v933 = vmul.f32 %v663, %v932
        %v934 = vmul.f32 %v664, %v932
        %v935 = vadd.f32 %v923, %v933
        %v936 = vadd.f32 %v924, %v934
        %s937 = sld [smem:[#allocation9 + $0x45]]
        %v938 = vstv %s937
        %v939 = vmul.f32 %v671, %v938
        %v940 = vmul.f32 %v672, %v938
        %v941 = vadd.f32 %v929, %v939
        %v942 = vadd.f32 %v930, %v940
        %v943 = vadd.f32 %v935, %v941
        %v944 = vadd.f32 %v936, %v942
        %945 = vrot.lane.b32.xlu0 %v943, 16
        %v946 = vpop.permute.xlu0 %945
        %947 = vrot.lane.b32.xlu0 %v944, 16
        %v948 = vpop.permute.xlu0 %947
        %vm949 = vcmp.lt.s32.totalorder %v343, 16
        %v950 = vsel %vm949, %v946, %v948
        %v951 = vsel %vm949, %v948, %v946
        %v952 = vrot.slane %v547, 2
        %v953 = vrot.slane %v548, 2
        %v956 = vmul.f32 %v951, %v952
        %v957 = vmul.f32 %v950, %v953
        %v958 = vadd.f32 %v861, %v956
        %v959 = vadd.f32 %v862, %v957
        %s960 = sld [smem:[#allocation9 + $0x15]]
        %v961 = vstv %s960
        %v962 = vmul.f32 %v556, %v961
        %v963 = vmul.f32 %v557, %v961
        %s964 = sld [smem:[#allocation9 + $0x46]]
        %v965 = vstv %s964
        %v966 = vmul.f32 %v564, %v965
        %v967 = vmul.f32 %v565, %v965
        %s968 = sld [smem:[#allocation9 + $0x16]]
        %v969 = vstv %s968
        %v970 = vmul.f32 %v579, %v969
        %v971 = vmul.f32 %v580, %v969
        %v972 = vadd.f32 %v962, %v970
        %v973 = vadd.f32 %v963, %v971
        %s974 = sld [smem:[#allocation9 + $0x47]]
        %v975 = vstv %s974
        %v976 = vmul.f32 %v587, %v975
        %v977 = vmul.f32 %v588, %v975
        %v978 = vadd.f32 %v966, %v976
        %v979 = vadd.f32 %v967, %v977
        %s980 = sld [smem:[#allocation9 + $0x17]]
        %v981 = vstv %s980
        %v982 = vmul.f32 %v600, %v981
        %v983 = vmul.f32 %v601, %v981
        %v984 = vadd.f32 %v972, %v982
        %v985 = vadd.f32 %v973, %v983
        %s986 = sld [smem:[#allocation9 + $0x48]]
        %v987 = vstv %s986
        %v988 = vmul.f32 %v608, %v987
        %v989 = vmul.f32 %v609, %v987
        %v990 = vadd.f32 %v978, %v988
        %v991 = vadd.f32 %v979, %v989
        %s992 = sld [smem:[#allocation9 + $0x18]]
        %v993 = vstv %s992
        %v994 = vmul.f32 %v520, %v993
        %v995 = vmul.f32 %v527, %v993
        %v996 = vadd.f32 %v984, %v994
        %v997 = vadd.f32 %v985, %v995
        %s998 = sld [smem:[#allocation9 + $0x49]]
        %v999 = vstv %s998
        %v1000 = vmul.f32 %v543, %v999
        %v1001 = vmul.f32 %v544, %v999
        %v1002 = vadd.f32 %v990, %v1000
        %v1003 = vadd.f32 %v991, %v1001
        %s1004 = sld [smem:[#allocation9 + $0x19]]
        %v1005 = vstv %s1004
        %v1006 = vmul.f32 %v621, %v1005
        %v1007 = vmul.f32 %v622, %v1005
        %v1008 = vadd.f32 %v996, %v1006
        %v1009 = vadd.f32 %v997, %v1007
        %s1010 = sld [smem:[#allocation9 + $0x4a]]
        %v1011 = vstv %s1010
        %v1012 = vmul.f32 %v629, %v1011
        %v1013 = vmul.f32 %v630, %v1011
        %v1014 = vadd.f32 %v1002, %v1012
        %v1015 = vadd.f32 %v1003, %v1013
        %s1016 = sld [smem:[#allocation9 + $0x1a]]
        %v1017 = vstv %s1016
        %v1018 = vmul.f32 %v642, %v1017
        %v1019 = vmul.f32 %v643, %v1017
        %v1020 = vadd.f32 %v1008, %v1018
        %v1021 = vadd.f32 %v1009, %v1019
        %s1022 = sld [smem:[#allocation9 + $0x4b]]
        %v1023 = vstv %s1022
        %v1024 = vmul.f32 %v650, %v1023
        %v1025 = vmul.f32 %v651, %v1023
        %v1026 = vadd.f32 %v1014, %v1024
        %v1027 = vadd.f32 %v1015, %v1025
        %s1028 = sld [smem:[#allocation9 + $0x1b]]
        %v1029 = vstv %s1028
        %v1030 = vmul.f32 %v663, %v1029
        %v1031 = vmul.f32 %v664, %v1029
        %v1032 = vadd.f32 %v1020, %v1030
        %v1033 = vadd.f32 %v1021, %v1031
        %s1034 = sld [smem:[#allocation9 + $0x4c]]
        %v1035 = vstv %s1034
        %v1036 = vmul.f32 %v671, %v1035
        %v1037 = vmul.f32 %v672, %v1035
        %v1038 = vadd.f32 %v1026, %v1036
        %v1039 = vadd.f32 %v1027, %v1037
        %v1040 = vadd.f32 %v1032, %v1038
        %v1041 = vadd.f32 %v1033, %v1039
        %v1042 = vadd.f32 %v958, %v1040
        %v1043 = vadd.f32 %v959, %v1041
        %s1044 = sld [smem:[#allocation9 + $0x1c]]
        %v1045 = vstv %s1044
        %v1046 = vmul.f32 %v556, %v1045
        %v1047 = vmul.f32 %v557, %v1045
        %s1048 = sld [smem:[#allocation9 + $0x4d]]
        %v1049 = vstv %s1048
        %v1050 = vmul.f32 %v564, %v1049
        %v1051 = vmul.f32 %v565, %v1049
        %s1052 = sld [smem:[#allocation9 + $0x1d]]
        %v1053 = vstv %s1052
        %v1054 = vmul.f32 %v579, %v1053
        %v1055 = vmul.f32 %v580, %v1053
        %v1056 = vadd.f32 %v1046, %v1054
        %v1057 = vadd.f32 %v1047, %v1055
        %s1058 = sld [smem:[#allocation9 + $0x4e]]
        %v1059 = vstv %s1058
        %v1060 = vmul.f32 %v587, %v1059
        %v1061 = vmul.f32 %v588, %v1059
        %v1062 = vadd.f32 %v1050, %v1060
        %v1063 = vadd.f32 %v1051, %v1061
        %s1064 = sld [smem:[#allocation9 + $0x1e]]
        %v1065 = vstv %s1064
        %v1066 = vmul.f32 %v600, %v1065
        %v1067 = vmul.f32 %v601, %v1065
        %v1068 = vadd.f32 %v1056, %v1066
        %v1069 = vadd.f32 %v1057, %v1067
        %s1070 = sld [smem:[#allocation9 + $0x4f]]
        %v1071 = vstv %s1070
        %v1072 = vmul.f32 %v608, %v1071
        %v1073 = vmul.f32 %v609, %v1071
        %v1074 = vadd.f32 %v1062, %v1072
        %v1075 = vadd.f32 %v1063, %v1073
        %s1076 = sld [smem:[#allocation9 + $0x1f]]
        %v1077 = vstv %s1076
        %v1078 = vmul.f32 %v520, %v1077
        %v1079 = vmul.f32 %v527, %v1077
        %v1080 = vadd.f32 %v1068, %v1078
        %v1081 = vadd.f32 %v1069, %v1079
        %s1082 = sld [smem:[#allocation9 + $0x50]]
        %v1083 = vstv %s1082
        %v1084 = vmul.f32 %v543, %v1083
        %v1085 = vmul.f32 %v544, %v1083
        %v1086 = vadd.f32 %v1074, %v1084
        %v1087 = vadd.f32 %v1075, %v1085
        %s1088 = sld [smem:[#allocation9 + $0x20]]
        %v1089 = vstv %s1088
        %v1090 = vmul.f32 %v621, %v1089
        %v1091 = vmul.f32 %v622, %v1089
        %v1092 = vadd.f32 %v1080, %v1090
        %v1093 = vadd.f32 %v1081, %v1091
        %s1094 = sld [smem:[#allocation9 + $0x51]]
        %v1095 = vstv %s1094
        %v1096 = vmul.f32 %v629, %v1095
        %v1097 = vmul.f32 %v630, %v1095
        %v1098 = vadd.f32 %v1086, %v1096
        %v1099 = vadd.f32 %v1087, %v1097
        %s1100 = sld [smem:[#allocation9 + $0x21]]
        %v1101 = vstv %s1100
        %v1102 = vmul.f32 %v642, %v1101
        %v1103 = vmul.f32 %v643, %v1101
        %v1104 = vadd.f32 %v1092, %v1102
        %v1105 = vadd.f32 %v1093, %v1103
        %s1106 = sld [smem:[#allocation9 + $0x52]]
        %v1107 = vstv %s1106
        %v1108 = vmul.f32 %v650, %v1107
        %v1109 = vmul.f32 %v651, %v1107
        %v1110 = vadd.f32 %v1098, %v1108
        %v1111 = vadd.f32 %v1099, %v1109
        %s1112 = sld [smem:[#allocation9 + $0x22]]
        %v1113 = vstv %s1112
        %v1114 = vmul.f32 %v663, %v1113
        %v1115 = vmul.f32 %v664, %v1113
        %v1116 = vadd.f32 %v1104, %v1114
        %v1117 = vadd.f32 %v1105, %v1115
        %s1118 = sld [smem:[#allocation9 + $0x53]]
        %v1119 = vstv %s1118
        %v1120 = vmul.f32 %v671, %v1119
        %v1121 = vmul.f32 %v672, %v1119
        %v1122 = vadd.f32 %v1110, %v1120
        %v1123 = vadd.f32 %v1111, %v1121
        %v1124 = vadd.f32 %v1116, %v1122
        %v1125 = vadd.f32 %v1117, %v1123
        %1126 = vrot.lane.b32.xlu0 %v1124, 112
        %v1127 = vpop.permute.xlu0 %1126
        %1128 = vrot.lane.b32.xlu0 %v1125, 112
        %v1129 = vpop.permute.xlu0 %1128
        %vm1130 = vcmp.lt.s32.totalorder %v343, 112
        %v1131 = vsel %vm1130, %v1127, %v1129
        %v1132 = vsel %vm1130, %v1129, %v1127
        %v1133 = vrot.slane %v547, 4
        %v1134 = vrot.slane %v548, 4
        %v1137 = vmul.f32 %v1131, %v1133
        %v1138 = vmul.f32 %v1132, %v1134
        %v1139 = vadd.f32 %v1042, %v1137
        %v1140 = vadd.f32 %v1043, %v1138
        %s1141 = sld [smem:[#allocation9 + $0x23]]
        %v1142 = vstv %s1141
        %v1143 = vmul.f32 %v556, %v1142
        %v1144 = vmul.f32 %v557, %v1142
        %s1145 = sld [smem:[#allocation9 + $0x54]]
        %v1146 = vstv %s1145
        %v1147 = vmul.f32 %v564, %v1146
        %v1148 = vmul.f32 %v565, %v1146
        %s1149 = sld [smem:[#allocation9 + $0x24]]
        %v1150 = vstv %s1149
        %v1151 = vmul.f32 %v579, %v1150
        %v1152 = vmul.f32 %v580, %v1150
        %v1153 = vadd.f32 %v1143, %v1151
        %v1154 = vadd.f32 %v1144, %v1152
        %s1155 = sld [smem:[#allocation9 + $0x55]]
        %v1156 = vstv %s1155
        %v1157 = vmul.f32 %v587, %v1156
        %v1158 = vmul.f32 %v588, %v1156
        %v1159 = vadd.f32 %v1147, %v1157
        %v1160 = vadd.f32 %v1148, %v1158
        %s1161 = sld [smem:[#allocation9 + $0x25]]
        %v1162 = vstv %s1161
        %v1163 = vmul.f32 %v600, %v1162
        %v1164 = vmul.f32 %v601, %v1162
        %v1165 = vadd.f32 %v1153, %v1163
        %v1166 = vadd.f32 %v1154, %v1164
        %s1167 = sld [smem:[#allocation9 + $0x56]]
        %v1168 = vstv %s1167
        %v1169 = vmul.f32 %v608, %v1168
        %v1170 = vmul.f32 %v609, %v1168
        %v1171 = vadd.f32 %v1159, %v1169
        %v1172 = vadd.f32 %v1160, %v1170
        %s1173 = sld [smem:[#allocation9 + $0x26]]
        %v1174 = vstv %s1173
        %v1175 = vmul.f32 %v520, %v1174
        %v1176 = vmul.f32 %v527, %v1174
        %v1177 = vadd.f32 %v1165, %v1175
        %v1178 = vadd.f32 %v1166, %v1176
        %s1179 = sld [smem:[#allocation9 + $0x57]]
        %v1180 = vstv %s1179
        %v1181 = vmul.f32 %v543, %v1180
        %v1182 = vmul.f32 %v544, %v1180
        %v1183 = vadd.f32 %v1171, %v1181
        %v1184 = vadd.f32 %v1172, %v1182
        %s1185 = sld [smem:[#allocation9 + $0x27]]
        %v1186 = vstv %s1185
        %v1187 = vmul.f32 %v621, %v1186
        %v1188 = vmul.f32 %v622, %v1186
        %v1189 = vadd.f32 %v1177, %v1187
        %v1190 = vadd.f32 %v1178, %v1188
        %s1191 = sld [smem:[#allocation9 + $0x58]]
        %v1192 = vstv %s1191
        %v1193 = vmul.f32 %v629, %v1192
        %v1194 = vmul.f32 %v630, %v1192
        %v1195 = vadd.f32 %v1183, %v1193
        %v1196 = vadd.f32 %v1184, %v1194
        %s1197 = sld [smem:[#allocation9 + $0x28]]
        %v1198 = vstv %s1197
        %v1199 = vmul.f32 %v642, %v1198
        %v1200 = vmul.f32 %v643, %v1198
        %v1201 = vadd.f32 %v1189, %v1199
        %v1202 = vadd.f32 %v1190, %v1200
        %s1203 = sld [smem:[#allocation9 + $0x59]]
        %v1204 = vstv %s1203
        %v1205 = vmul.f32 %v650, %v1204
        %v1206 = vmul.f32 %v651, %v1204
        %v1207 = vadd.f32 %v1195, %v1205
        %v1208 = vadd.f32 %v1196, %v1206
        %s1209 = sld [smem:[#allocation9 + $0x29]]
        %v1210 = vstv %s1209
        %v1211 = vmul.f32 %v663, %v1210
        %v1212 = vmul.f32 %v664, %v1210
        %v1213 = vadd.f32 %v1201, %v1211
        %v1214 = vadd.f32 %v1202, %v1212
        %s1215 = sld [smem:[#allocation9 + $0x5a]]
        %v1216 = vstv %s1215
        %v1217 = vmul.f32 %v671, %v1216
        %v1218 = vmul.f32 %v672, %v1216
        %v1219 = vadd.f32 %v1207, %v1217
        %v1220 = vadd.f32 %v1208, %v1218
        %v1221 = vadd.f32 %v1213, %v1219
        %v1222 = vadd.f32 %v1214, %v1220
        %1223 = vrot.lane.b32.xlu0 %v1221, 96
        %v1224 = vpop.permute.xlu0 %1223
        %1225 = vrot.lane.b32.xlu0 %v1222, 96
        %v1226 = vpop.permute.xlu0 %1225
        %vm1227 = vcmp.lt.s32.totalorder %v343, 96
        %v1228 = vsel %vm1227, %v1224, %v1226
        %v1229 = vsel %vm1227, %v1226, %v1224
        %v1230 = vrot.slane %v547, 5
        %v1231 = vrot.slane %v548, 5
        %v1234 = vmul.f32 %v1228, %v1230
        %v1235 = vmul.f32 %v1229, %v1231
        %v1236 = vadd.f32 %v1139, %v1234
        %v1237 = vadd.f32 %v1140, %v1235
        %s1238 = sld [smem:[#allocation9 + $0x2a]]
        %v1239 = vstv %s1238
        %v1240 = vmul.f32 %v556, %v1239
        %v1241 = vmul.f32 %v557, %v1239
        %s1242 = sld [smem:[#allocation9 + $0x5b]]
        %v1243 = vstv %s1242
        %v1244 = vmul.f32 %v564, %v1243
        %v1245 = vmul.f32 %v565, %v1243
        %s1246 = sld [smem:[#allocation9 + $0x2b]]
        %v1247 = vstv %s1246
        %v1248 = vmul.f32 %v579, %v1247
        %v1249 = vmul.f32 %v580, %v1247
        %v1250 = vadd.f32 %v1240, %v1248
        %v1251 = vadd.f32 %v1241, %v1249
        %s1252 = sld [smem:[#allocation9 + $0x5c]]
        %v1253 = vstv %s1252
        %v1254 = vmul.f32 %v587, %v1253
        %v1255 = vmul.f32 %v588, %v1253
        %v1256 = vadd.f32 %v1244, %v1254
        %v1257 = vadd.f32 %v1245, %v1255
        %s1258 = sld [smem:[#allocation9 + $0x2c]]
        %v1259 = vstv %s1258
        %v1260 = vmul.f32 %v600, %v1259
        %v1261 = vmul.f32 %v601, %v1259
        %v1262 = vadd.f32 %v1250, %v1260
        %v1263 = vadd.f32 %v1251, %v1261
        %s1264 = sld [smem:[#allocation9 + $0x5d]]
        %v1265 = vstv %s1264
        %v1266 = vmul.f32 %v608, %v1265
        %v1267 = vmul.f32 %v609, %v1265
        %v1268 = vadd.f32 %v1256, %v1266
        %v1269 = vadd.f32 %v1257, %v1267
        %s1270 = sld [smem:[#allocation9 + $0x2d]]
        %v1271 = vstv %s1270
        %v1272 = vmul.f32 %v520, %v1271
        %v1273 = vmul.f32 %v527, %v1271
        %v1274 = vadd.f32 %v1262, %v1272
        %v1275 = vadd.f32 %v1263, %v1273
        %s1276 = sld [smem:[#allocation9 + $0x5e]]
        %v1277 = vstv %s1276
        %v1278 = vmul.f32 %v543, %v1277
        %v1279 = vmul.f32 %v544, %v1277
        %v1280 = vadd.f32 %v1268, %v1278
        %v1281 = vadd.f32 %v1269, %v1279
        %s1282 = sld [smem:[#allocation9 + $0x2e]]
        %v1283 = vstv %s1282
        %v1284 = vmul.f32 %v621, %v1283
        %v1285 = vmul.f32 %v622, %v1283
        %v1286 = vadd.f32 %v1274, %v1284
        %v1287 = vadd.f32 %v1275, %v1285
        %s1288 = sld [smem:[#allocation9 + $0x5f]]
        %v1289 = vstv %s1288
        %v1290 = vmul.f32 %v629, %v1289
        %v1291 = vmul.f32 %v630, %v1289
        %v1292 = vadd.f32 %v1280, %v1290
        %v1293 = vadd.f32 %v1281, %v1291
        %s1294 = sld [smem:[#allocation9 + $0x2f]]
        %v1295 = vstv %s1294
        %v1296 = vmul.f32 %v642, %v1295
        %v1297 = vmul.f32 %v643, %v1295
        %v1298 = vadd.f32 %v1286, %v1296
        %v1299 = vadd.f32 %v1287, %v1297
        %s1300 = sld [smem:[#allocation9 + $0x60]]
        %v1301 = vstv %s1300
        %v1302 = vmul.f32 %v650, %v1301
        %v1303 = vmul.f32 %v651, %v1301
        %v1304 = vadd.f32 %v1292, %v1302
        %v1305 = vadd.f32 %v1293, %v1303
        %s1306 = sld [smem:[#allocation9 + $0x30]]
        %v1307 = vstv %s1306
        %v1308 = vmul.f32 %v663, %v1307
        %v1309 = vmul.f32 %v664, %v1307
        %v1310 = vadd.f32 %v1298, %v1308
        %v1311 = vadd.f32 %v1299, %v1309
        %s1312 = sld [smem:[#allocation9 + $0x61]]
        %v1313 = vstv %s1312
        %v1314 = vmul.f32 %v671, %v1313
        %v1315 = vmul.f32 %v672, %v1313
        %v1316 = vadd.f32 %v1304, %v1314
        %v1317 = vadd.f32 %v1305, %v1315
        %v1318 = vadd.f32 %v1310, %v1316
        %v1319 = vadd.f32 %v1311, %v1317
        %1320 = vrot.lane.b32.xlu0 %v1318, 80
        %v1321 = vpop.permute.xlu0 %1320
        %1322 = vrot.lane.b32.xlu0 %v1319, 80
        %v1323 = vpop.permute.xlu0 %1322
        %vm1324 = vcmp.lt.s32.totalorder %v343, 80
        %v1325 = vsel %vm1324, %v1321, %v1323
        %v1326 = vsel %vm1324, %v1323, %v1321
        %v1327 = vrot.slane %v547, 6
        %v1328 = vrot.slane %v548, 6
        %v1331 = vmul.f32 %v1325, %v1327
        %v1332 = vmul.f32 %v1326, %v1328
        %v1333 = vadd.f32 %v1236, %v1331
        %v1334 = vadd.f32 %v1237, %v1332
        %s1335 = sld [smem:[#allocation2]]
        %v1336 = vstv %s1335
        %v1337 = vadd.f32 %v1333, %v1336
        %v1338 = vadd.f32 %v1334, %v1336
        %v1339 = vxor.u32 %v1337, 2147483648
        %v1340 = vxor.u32 %v1338, 2147483648
        %v1341 = vmul.f32 %v1339, 1.442695
        %v1342 = vpow.pop %v1341
        %v1343 = vmul.f32 %v1340, 1.442695
        %v1344 = vpow.pop %v1343
        %v1345 = vadd.f32 %v1342, 1.0
        %v1346 = vadd.f32 %v1344, 1.0
        %v1347 = vrcp.pop %v1345
        %v1348 = vmul.f32 1.0, %v1347
        %v1349 = vrcp.pop %v1346
        %v1350 = vmul.f32 1.0, %v1349
        %v1351 = vlaneseq
        %v1352 = vshrl.u32 %v1351, 7
        %v1353 = vsub.s32 0, %v1352
        %v1354 = vrot.slane %v513, %v1353
        %1356 = vbcast.lane.b32.xlu0 %v1354, 256
        %v1357 = vpop.permute.xlu0 %1356
        %s1359 = sor.u32 256, 8
        %1360 = vbcast.lane.b32.xlu0 %v1354, %s1359
        %v1361 = vpop.permute.xlu0 %1360
        %v1362 = vlaneseq
        %v1363 = vshrl.u32 %v1362, 7
        %v1364 = vsub.s32 0, %v1363
        %v1365 = vrot.slane %v1348, %v1364
        %v1366 = vlaneseq
        %v1367 = vshrl.u32 %v1366, 7
        %v1368 = vsub.s32 0, %v1367
        %v1369 = vrot.slane %v1350, %v1368
        %v1370 = vadd.f32 %v1357, %v1365
        %v1371 = vadd.f32 %v1357, %v1369
        %v1372 = vadd.f32 %v1361, %v1365
        %v1373 = vadd.f32 %v1361, %v1369
        %v1374 = vmul.f32 %v325, %v1370
        %v1375 = vmul.f32 %v326, %v1371
        %v1376 = vmul.f32 %v327, %v1372
        %v1377 = vmul.f32 %v328, %v1373
        %1378 = vst [vmem:[%s324] sm:$0xff] %v1374
        %1379 = vst [vmem:[%s324 + $0x8] sm:$0xff] %v1375
        %1380 = vst [vmem:[%s324 + $0x10] sm:$0xff] %v1376
        %1381 = vst [vmem:[%s324 + $0x18] sm:$0xff] %v1377
        %s1382 = sand.u32 %s187, 1
        %s1383 = scalar_lea.sflag [#allocation5], %s1382
        %s1384 = sand.u32 %s187, 1
        %s1385 = smul.addr %s1384, 32
        %s1386 = scalar_lea.vmem [#allocation10], %s1385
        // Predicated region
        $region61: #{tpu_custom_call.1} parent=47 // pred_check
          %p1387 = pneg %p197
        $region62: #{tpu_custom_call.1} parent=47 // pred_check_branch
          %1389 = sbr.rel (%p1387) target = $region64
        $region63: #{tpu_custom_call.1} parent=47 // pred_region
          %s1391 = ssub.s32 512, 512
          %1392 = vsyncadd %s1383, %s1391
          %s1393 = smul.addr %s27, 4
          %s1394 = smul.addr %s1393, 128
          %s1395 = scalar_lea.hbm %s7, %s1394
          %s1396 = sshll.u32 %s1386, 4
          %s1397 = int_to_ptr.vmem [resolvable:$true] %s1396
          %1402 = dma.vmem_to_hbm [thread:$0]  %s1397, 512, %s1395, %s1383, 256, 256, 16
        $region64: #{tpu_custom_call.1} parent=47 // pred_fallthru
          _
      $region48: #{tpu_custom_call.1} parent=5 // pred_fallthru
        _
      %p1403 = scmp.le.s32.totalorder 2, %s22
      // Predicated region
      $region65: #{tpu_custom_call.1} parent=5 // pred_check
        %p1404 = pneg %p1403
      $region66: #{tpu_custom_call.1} parent=5 // pred_check_branch
        %1406 = sbr.rel (%p1404) target = $region68
      $region67: #{tpu_custom_call.1} parent=5 // pred_region
        %s1407 = ssub.s32 %s22, 2
        // Predicated region
        $region69: #{tpu_custom_call.1} parent=67 // pred_check
          %p1408 = pneg %p203
        $region70: #{tpu_custom_call.1} parent=67 // pred_check_branch
          %1410 = sbr.rel (%p1408) target = $region72
        $region71: #{tpu_custom_call.1} parent=67 // pred_region
          %s1411 = sand.u32 %s188, 1
          %s1412 = scalar_lea.sflag [#allocation5], %s1411
          %s1413 = sand.u32 %s188, 1
          %s1414 = smul.addr %s1413, 32
          %s1415 = scalar_lea.vmem [#allocation10], %s1414
          %1416 = dma.done %s1412, 512
        $region72: #{tpu_custom_call.1} parent=67 // pred_fallthru
          _
      $region68: #{tpu_custom_call.1} parent=5 // pred_fallthru
        _
    $region6: #{tpu_custom_call.1} parent=1 // loop_footer
      %s26 = sadd.s32 1, %s22
    $region7: #{tpu_custom_call.1} parent=1 // loop_footer_branch
      %21 = sbr.rel target = $region3
    $region8: #{tpu_custom_call.1} parent=1 // loop_exit
      _
    %1417 = vsyncpa [#allocation4], 1
    %s1418 = scalar_lea.sflag [#allocation4], 1
    %1419 = vsyncpa %s1418, 1
    %1420 = vsyncpa [#allocation8], 1
    %1421 = vsyncpa [#allocation5], 1
    %s1422 = scalar_lea.sflag [#allocation5], 1
    %1423 = vsyncpa %s1422, 1
    %1424 = vsyncpa [#allocation6], 1
    %s1425 = scalar_lea.sflag [#allocation6], 1
    %1426 = vsyncpa %s1425, 1

</llo_original>
